<compile_context>
chip_gen: v5e
topology: v5e:2x2
jax: 0.10.0
libtpu: 0.0.40
codegen_flags: <defaults>
</compile_context>

<pallas_src>
import functools
import math

import jax
import jax.numpy as jnp
from jax.experimental import pallas as pl
from jax.experimental.pallas import tpu as pltpu


# ---------------------------------------------------------------------------
# Fully fused kernel (small-N path): whole forward in one pallas_call.
# ---------------------------------------------------------------------------
def gcn_fused_kernel(a_ref, x_ref, w1_ref, b1_ref, w2_ref, b2_ref,
                     w3_ref, b3_ref, p_ref, wl_ref, bl_ref, o_ref):
    a = a_ref[...]                                    # bf16 [N, N], read once

    def layer(h_bf, w_ref, b_ref, relu):
        # Aggregate-first: (A @ H) @ W + b  (== A @ (H @ W) + b).
        agg = jnp.dot(a, h_bf, preferred_element_type=jnp.float32)
        z = jnp.dot(agg.astype(jnp.bfloat16), w_ref[...],
                    preferred_element_type=jnp.float32) + b_ref[...]
        if relu:
            z = jnp.maximum(z, 0.0)
        return z.astype(jnp.bfloat16)

    h = layer(x_ref[...], w1_ref, b1_ref, True)
    h = layer(h, w2_ref, b2_ref, True)
    h = layer(h, w3_ref, b3_ref, False)

    # global_mean_pool + dropout(p=0.5, eval -> identity) + Linear head.
    pooled = jnp.dot(p_ref[...], h, preferred_element_type=jnp.float32)
    o_ref[...] = (jnp.dot(pooled.astype(jnp.bfloat16), wl_ref[...],
                          preferred_element_type=jnp.float32) + bl_ref[...])


# ---------------------------------------------------------------------------
# Tiled kernels (large-N fallback path)
# ---------------------------------------------------------------------------
def gcn_layer_kernel(a_ref, h_ref, w_ref, b_ref, o_ref, acc_ref, *, relu):
    """One GCNConv layer: out[i] = (relu)( (sum_k A[i,k] @ H[k]) @ W + b )."""
    k = pl.program_id(1)

    @pl.when(k == 0)
    def _():
        acc_ref[...] = jnp.zeros_like(acc_ref)

    acc_ref[...] += jnp.dot(a_ref[...], h_ref[...],
                            preferred_element_type=jnp.float32)

    @pl.when(k == pl.num_programs(1) - 1)
    def _():
        z = jnp.dot(acc_ref[...].astype(w_ref.dtype), w_ref[...],
                    preferred_element_type=jnp.float32) + b_ref[...]
        if relu:
            z = jnp.maximum(z, 0.0)
        o_ref[...] = z.astype(o_ref.dtype)


def gcn_head_kernel(p_ref, h_ref, wl_ref, bl_ref, o_ref, acc_ref):
    """Mean pool + linear head: logits = (P @ H3) @ W_lin + b_lin."""
    k = pl.program_id(0)

    @pl.when(k == 0)
    def _():
        acc_ref[...] = jnp.zeros_like(acc_ref)

    acc_ref[...] += jnp.dot(p_ref[...], h_ref[...],
                            preferred_element_type=jnp.float32)

    @pl.when(k == pl.num_programs(0) - 1)
    def _():
        o_ref[...] = (jnp.dot(acc_ref[...].astype(wl_ref.dtype), wl_ref[...],
                              preferred_element_type=jnp.float32)
                      + bl_ref[...])


# ---------------------------------------------------------------------------
# pallas_call wrappers
# ---------------------------------------------------------------------------
def _vmem_budget_bytes(*block_bytes, scratch_bytes=0):
    b = 2 * sum(block_bytes) + scratch_bytes + 2 * 1024 * 1024
    return int(min(max(b, 4 * 1024 * 1024), 48 * 1024 * 1024))


def _gcn_fused(a_bf, x_bf, params, p_bf):
    n = a_bf.shape[0]
    hidden = params["w2"].shape[0]
    cpad = params["wl"].shape[1]
    g = p_bf.shape[0]

    in_bytes = ((a_bf.size + x_bf.size + p_bf.size) * 2
                + sum(params[k].size for k in ("w1", "w2", "w3", "wl")) * 2
                + sum(params[k].size for k in ("b1", "b2", "b3", "bl")) * 4)
    live_f32 = 4 * n * hidden * 4 + g * cpad * 4
    vmem_bytes = _vmem_budget_bytes(in_bytes, live_f32)

    vspec = pl.BlockSpec(memory_space=pltpu.MemorySpace.VMEM)
    return pl.pallas_call(
        gcn_fused_kernel,
        out_shape=jax.ShapeDtypeStruct((g, cpad), jnp.float32),
        in_specs=[vspec] * 11,
        out_specs=vspec,
        compiler_params=pltpu.CompilerParams(vmem_limit_bytes=vmem_bytes),
    )(a_bf, x_bf,
      params["w1"].astype(jnp.bfloat16), params["b1"],
      params["w2"].astype(jnp.bfloat16), params["b2"],
      params["w3"].astype(jnp.bfloat16), params["b3"],
      p_bf,
      params["wl"].astype(jnp.bfloat16), params["bl"])


def _gcn_layer(a_bf, h_bf, w, b, *, relu, tm, tk):
    n = a_bf.shape[0]
    hin = h_bf.shape[1]
    hout = w.shape[1]
    assert n % tm == 0 and n % tk == 0

    vmem_bytes = _vmem_budget_bytes(
        tm * tk * 2, tk * hin * 2, hin * hout * 2, hout * 4, tm * hout * 2,
        scratch_bytes=tm * hin * 4)

    kernel = functools.partial(gcn_layer_kernel, relu=relu)
    return pl.pallas_call(
        kernel,
        out_shape=jax.ShapeDtypeStruct((n, hout), jnp.bfloat16),
        grid_spec=pltpu.PrefetchScalarGridSpec(
            num_scalar_prefetch=0,
            grid=(n // tm, n // tk),
            in_specs=[
                pl.BlockSpec((tm, tk), lambda i, k: (i, k)),      # A_hat tile
                pl.BlockSpec((tk, hin), lambda i, k: (k, 0)),     # H tile
                pl.BlockSpec((hin, hout), lambda i, k: (0, 0)),   # W (resident)
                pl.BlockSpec((1, hout), lambda i, k: (0, 0)),     # bias (f32)
            ],
            out_specs=pl.BlockSpec((tm, hout), lambda i, k: (i, 0)),
            scratch_shapes=[pltpu.VMEM((tm, hin), jnp.float32)],
        ),
        compiler_params=pltpu.CompilerParams(
            dimension_semantics=("parallel", "arbitrary"),
            vmem_limit_bytes=vmem_bytes),
    )(a_bf, h_bf, w.astype(jnp.bfloat16), b)


def _gcn_head(p_bf, h_bf, wl, bl, *, tk):
    g, n = p_bf.shape
    hid = h_bf.shape[1]
    cpad = wl.shape[1]
    assert n % tk == 0

    vmem_bytes = _vmem_budget_bytes(
        g * tk * 2, tk * hid * 2, hid * cpad * 2, cpad * 4, g * cpad * 4,
        scratch_bytes=g * hid * 4)

    return pl.pallas_call(
        gcn_head_kernel,
        out_shape=jax.ShapeDtypeStruct((g, cpad), jnp.float32),
        grid_spec=pltpu.PrefetchScalarGridSpec(
            num_scalar_prefetch=0,
            grid=(n // tk,),
            in_specs=[
                pl.BlockSpec((g, tk), lambda k: (0, k)),          # pooling tile
                pl.BlockSpec((tk, hid), lambda k: (k, 0)),        # H3 tile
                pl.BlockSpec((hid, cpad), lambda k: (0, 0)),      # W_lin (padded)
                pl.BlockSpec((1, cpad), lambda k: (0, 0)),        # b_lin (padded)
            ],
            out_specs=pl.BlockSpec((g, cpad), lambda k: (0, 0)),
            scratch_shapes=[pltpu.VMEM((g, hid), jnp.float32)],
        ),
        compiler_params=pltpu.CompilerParams(
            dimension_semantics=("arbitrary",),
            vmem_limit_bytes=vmem_bytes),
    )(p_bf, h_bf, wl.astype(jnp.bfloat16), bl)


def gcn_forward(a_hat, x, params, pool_mat, *, tm=128, tk=128,
                fused_vmem_budget=24 << 20):
    """Full forward. Returns [num_graphs, class_pad] logits (slice classes outside)."""
    n = a_hat.shape[0]
    tile = math.lcm(tm, tk)
    n_pad = ((n + tile - 1) // tile) * tile
    if n_pad != n:
        # Zero-padded nodes have zero A rows/cols and zero pool columns, so they
        # never influence real nodes or graph readouts.
        a_hat = jnp.pad(a_hat, ((0, n_pad - n), (0, n_pad - n)))
        x = jnp.pad(x, ((0, n_pad - n), (0, 0)))
        pool_mat = jnp.pad(pool_mat, ((0, 0), (0, n_pad - n)))

    g = pool_mat.shape[0]
    g_pad = ((g + 7) // 8) * 8
    if g_pad != g:
        pool_mat = jnp.pad(pool_mat, ((0, g_pad - g), (0, 0)))

    a_bf = a_hat.astype(jnp.bfloat16)
    x_bf = x.astype(jnp.bfloat16)
    p_bf = pool_mat.astype(jnp.bfloat16)

    hidden = params["w2"].shape[0]
    footprint = ((a_bf.size + x_bf.size + p_bf.size) * 2
                 + 6 * n_pad * hidden * 4)
    if footprint <= fused_vmem_budget:
        logits = _gcn_fused(a_bf, x_bf, params, p_bf)
    else:
        h = _gcn_layer(a_bf, x_bf, params["w1"], params["b1"],
                       relu=True, tm=tm, tk=tk)
        h = _gcn_layer(a_bf, h, params["w2"], params["b2"],
                       relu=True, tm=tm, tk=tk)
        h = _gcn_layer(a_bf, h, params["w3"], params["b3"],
                       relu=False, tm=tm, tk=tk)
        logits = _gcn_head(p_bf, h, params["wl"], params["bl"], tk=tk)
    return logits[:g]


# ---------------------------------------------------------------------------
# Plain-JAX glue (graph preprocessing, params, reference)
# ---------------------------------------------------------------------------
def build_normalized_adjacency(edge_index, num_nodes):
    """D^-1/2 (A + I) D^-1/2 as dense [N, N] float32 (GCNConv normalization)."""
    src, dst = edge_index[0], edge_index[1]
    adj = jnp.zeros((num_nodes, num_nodes), jnp.float32)
    adj = adj.at[dst, src].add(1.0)
    adj = adj + jnp.eye(num_nodes, dtype=jnp.float32)
    deg = adj.sum(axis=1)
    dinv = jnp.where(deg > 0, jax.lax.rsqrt(deg), 0.0)
    return dinv[:, None] * adj * dinv[None, :]


def build_mean_pool_matrix(batch, num_graphs, num_nodes):
    """P[g, n] = 1/|graph g| if node n belongs to graph g."""
    onehot = (batch[None, :] == jnp.arange(num_graphs)[:, None]).astype(jnp.float32)
    counts = onehot.sum(axis=1, keepdims=True)
    return onehot / jnp.maximum(counts, 1.0)


def init_params(key, num_node_feature, hidden, num_classes, feat_pad, class_pad):
    ks = jax.random.split(key, 6)

    def glorot(k, shape):
        fan_in, fan_out = shape
        lim = jnp.sqrt(6.0 / (fan_in + fan_out))
        return jax.random.uniform(k, shape, jnp.float32, -lim, lim)

    # W1 zero-padded along the input-feature axis (math-identical).
    w1 = jnp.zeros((feat_pad, hidden), jnp.float32)
    w1 = w1.at[:num_node_feature, :].set(glorot(ks[0], (num_node_feature, hidden)))
    # Linear head zero-padded along the class axis for lane-dense stores.
    wl = jnp.zeros((hidden, class_pad), jnp.float32)
    wl = wl.at[:, :num_classes].set(glorot(ks[3], (hidden, num_classes)))
    bl = jnp.zeros((1, class_pad), jnp.float32)
    bl = bl.at[:, :num_classes].set(
        jax.random.uniform(ks[4], (1, num_classes), jnp.float32, -0.1, 0.1))
    return {
        "w1": w1, "b1": jnp.zeros((1, hidden), jnp.float32),
        "w2": glorot(ks[1], (hidden, hidden)),
        "b2": jnp.zeros((1, hidden), jnp.float32),
        "w3": glorot(ks[2], (hidden, hidden)),
        "b3": jnp.zeros((1, hidden), jnp.float32),
        "wl": wl, "bl": bl,
    }


def reference_forward(a_hat, x, params, pool_mat):
    h = jnp.maximum(a_hat @ (x @ params["w1"]) + params["b1"], 0.0)
    h = jnp.maximum(a_hat @ (h @ params["w2"]) + params["b2"], 0.0)
    h = a_hat @ (h @ params["w3"]) + params["b3"]
    pooled = pool_mat @ h
    return pooled @ params["wl"] + params["bl"]


# ---------------------------------------------------------------------------
if __name__ == "__main__":
    key = jax.random.PRNGKey(0)

    num_graphs = 8
    nodes_per_graph = 32
    num_nodes = num_graphs * nodes_per_graph     # 256 nodes total
    num_node_feature = 1
    feat_pad = 128                               # zero-padded feature lanes
    hidden = 128
    num_classes = 4
    class_pad = 128                              # lane-dense output, sliced below

    # Undirected ring graph per graph (deterministic).
    edges = []
    for g in range(num_graphs):
        base = g * nodes_per_graph
        for i in range(nodes_per_graph):
            a, b = base + i, base + (i + 1) % nodes_per_graph
            edges.append((a, b))
            edges.append((b, a))
    edge_index = jnp.array(edges, dtype=jnp.int32).T                    # [2, E]
    batch = jnp.repeat(jnp.arange(num_graphs, dtype=jnp.int32), nodes_per_graph)

    k_x, k_p = jax.random.split(key)
    x_raw = jax.random.normal(k_x, (num_nodes, num_node_feature), jnp.float32)
    x = jnp.zeros((num_nodes, feat_pad), jnp.float32)
    x = x.at[:, :num_node_feature].set(x_raw)

    a_hat = build_normalized_adjacency(edge_index, num_nodes)
    pool_mat = build_mean_pool_matrix(batch, num_graphs, num_nodes)
    params = init_params(k_p, num_node_feature, hidden, num_classes,
                         feat_pad, class_pad)

    logits_pad = jax.block_until_ready(gcn_forward(a_hat, x, params, pool_mat))
    logits = logits_pad[:, :num_classes]

    ref = reference_forward(a_hat, x, params, pool_mat)[:, :num_classes]

    assert logits.shape == (num_graphs, num_classes)
    assert jnp.all(jnp.isfinite(logits))
    assert jnp.allclose(logits, ref, rtol=1e-1, atol=1e-1), (logits, ref)
    print("KERNEL_OK")
</pallas_src>

<mosaic_0001>
module attributes {stable_mosaic.version = 11 : i64} {
  func.func @gcn_fused_kernel(%arg0: memref<256x256xbf16, #tpu.memory_space<vmem>>, %arg1: memref<256x128xbf16, #tpu.memory_space<vmem>>, %arg2: memref<128x128xbf16, #tpu.memory_space<vmem>>, %arg3: memref<1x128xf32, #tpu.memory_space<vmem>>, %arg4: memref<128x128xbf16, #tpu.memory_space<vmem>>, %arg5: memref<1x128xf32, #tpu.memory_space<vmem>>, %arg6: memref<128x128xbf16, #tpu.memory_space<vmem>>, %arg7: memref<1x128xf32, #tpu.memory_space<vmem>>, %arg8: memref<8x256xbf16, #tpu.memory_space<vmem>>, %arg9: memref<128x128xbf16, #tpu.memory_space<vmem>>, %arg10: memref<1x128xf32, #tpu.memory_space<vmem>>, %arg11: memref<8x128xf32, #tpu.memory_space<vmem>>) attributes {dimension_semantics = [], scalar_prefetch = 0 : i64, scratch_operands = 0 : i64, tpu.core_type = #tpu.core_type<tc>} {
    %c0 = arith.constant 0 : index
    %c0_0 = arith.constant 0 : index
    %0 = vector.load %arg0[%c0, %c0_0] : memref<256x256xbf16, #tpu.memory_space<vmem>>, vector<256x256xbf16>
    %c0_1 = arith.constant 0 : index
    %c0_2 = arith.constant 0 : index
    %1 = vector.load %arg1[%c0_1, %c0_2] : memref<256x128xbf16, #tpu.memory_space<vmem>>, vector<256x128xbf16>
    %cst = arith.constant dense<0.000000e+00> : vector<256x128xf32>
    %2 = tpu.matmul %0, %1, %cst {dimension_numbers = #tpu.dot_dimension_numbers<[1], [0], [0], [1], [0, 0, 1, 1], [], []>} : vector<256x256xbf16>, vector<256x128xbf16>, vector<256x128xf32> -> vector<256x128xf32>
    %3 = arith.truncf %2 : vector<256x128xf32> to vector<256x128xbf16>
    %c0_3 = arith.constant 0 : index
    %c0_4 = arith.constant 0 : index
    %4 = vector.load %arg2[%c0_3, %c0_4] : memref<128x128xbf16, #tpu.memory_space<vmem>>, vector<128x128xbf16>
    %cst_5 = arith.constant dense<0.000000e+00> : vector<256x128xf32>
    %5 = tpu.matmul %3, %4, %cst_5 {dimension_numbers = #tpu.dot_dimension_numbers<[1], [0], [0], [1], [0, 0, 1, 1], [], []>} : vector<256x128xbf16>, vector<128x128xbf16>, vector<256x128xf32> -> vector<256x128xf32>
    %c0_6 = arith.constant 0 : index
    %c0_7 = arith.constant 0 : index
    %6 = vector.load %arg3[%c0_6, %c0_7] : memref<1x128xf32, #tpu.memory_space<vmem>>, vector<1x128xf32>
    %7 = vector.broadcast %6 : vector<1x128xf32> to vector<256x128xf32>
    %8 = arith.addf %5, %7 : vector<256x128xf32>
    %cst_8 = arith.constant 0.000000e+00 : f32
    %9 = vector.broadcast %cst_8 : f32 to vector<256x128xf32>
    %10 = arith.maximumf %8, %9 : vector<256x128xf32>
    %11 = arith.truncf %10 : vector<256x128xf32> to vector<256x128xbf16>
    %cst_9 = arith.constant dense<0.000000e+00> : vector<256x128xf32>
    %12 = tpu.matmul %0, %11, %cst_9 {dimension_numbers = #tpu.dot_dimension_numbers<[1], [0], [0], [1], [0, 0, 1, 1], [], []>} : vector<256x256xbf16>, vector<256x128xbf16>, vector<256x128xf32> -> vector<256x128xf32>
    %13 = arith.truncf %12 : vector<256x128xf32> to vector<256x128xbf16>
    %c0_10 = arith.constant 0 : index
    %c0_11 = arith.constant 0 : index
    %14 = vector.load %arg4[%c0_10, %c0_11] : memref<128x128xbf16, #tpu.memory_space<vmem>>, vector<128x128xbf16>
    %cst_12 = arith.constant dense<0.000000e+00> : vector<256x128xf32>
    %15 = tpu.matmul %13, %14, %cst_12 {dimension_numbers = #tpu.dot_dimension_numbers<[1], [0], [0], [1], [0, 0, 1, 1], [], []>} : vector<256x128xbf16>, vector<128x128xbf16>, vector<256x128xf32> -> vector<256x128xf32>
    %c0_13 = arith.constant 0 : index
    %c0_14 = arith.constant 0 : index
    %16 = vector.load %arg5[%c0_13, %c0_14] : memref<1x128xf32, #tpu.memory_space<vmem>>, vector<1x128xf32>
    %17 = vector.broadcast %16 : vector<1x128xf32> to vector<256x128xf32>
    %18 = arith.addf %15, %17 : vector<256x128xf32>
    %cst_15 = arith.constant 0.000000e+00 : f32
    %19 = vector.broadcast %cst_15 : f32 to vector<256x128xf32>
    %20 = arith.maximumf %18, %19 : vector<256x128xf32>
    %21 = arith.truncf %20 : vector<256x128xf32> to vector<256x128xbf16>
    %cst_16 = arith.constant dense<0.000000e+00> : vector<256x128xf32>
    %22 = tpu.matmul %0, %21, %cst_16 {dimension_numbers = #tpu.dot_dimension_numbers<[1], [0], [0], [1], [0, 0, 1, 1], [], []>} : vector<256x256xbf16>, vector<256x128xbf16>, vector<256x128xf32> -> vector<256x128xf32>
    %23 = arith.truncf %22 : vector<256x128xf32> to vector<256x128xbf16>
    %c0_17 = arith.constant 0 : index
    %c0_18 = arith.constant 0 : index
    %24 = vector.load %arg6[%c0_17, %c0_18] : memref<128x128xbf16, #tpu.memory_space<vmem>>, vector<128x128xbf16>
    %cst_19 = arith.constant dense<0.000000e+00> : vector<256x128xf32>
    %25 = tpu.matmul %23, %24, %cst_19 {dimension_numbers = #tpu.dot_dimension_numbers<[1], [0], [0], [1], [0, 0, 1, 1], [], []>} : vector<256x128xbf16>, vector<128x128xbf16>, vector<256x128xf32> -> vector<256x128xf32>
    %c0_20 = arith.constant 0 : index
    %c0_21 = arith.constant 0 : index
    %26 = vector.load %arg7[%c0_20, %c0_21] : memref<1x128xf32, #tpu.memory_space<vmem>>, vector<1x128xf32>
    %27 = vector.broadcast %26 : vector<1x128xf32> to vector<256x128xf32>
    %28 = arith.addf %25, %27 : vector<256x128xf32>
    %29 = arith.truncf %28 : vector<256x128xf32> to vector<256x128xbf16>
    %c0_22 = arith.constant 0 : index
    %c0_23 = arith.constant 0 : index
    %30 = vector.load %arg8[%c0_22, %c0_23] : memref<8x256xbf16, #tpu.memory_space<vmem>>, vector<8x256xbf16>
    %cst_24 = arith.constant dense<0.000000e+00> : vector<8x128xf32>
    %31 = tpu.matmul %30, %29, %cst_24 {dimension_numbers = #tpu.dot_dimension_numbers<[1], [0], [0], [1], [0, 0, 1, 1], [], []>} : vector<8x256xbf16>, vector<256x128xbf16>, vector<8x128xf32> -> vector<8x128xf32>
    %32 = arith.truncf %31 : vector<8x128xf32> to vector<8x128xbf16>
    %c0_25 = arith.constant 0 : index
    %c0_26 = arith.constant 0 : index
    %33 = vector.load %arg9[%c0_25, %c0_26] : memref<128x128xbf16, #tpu.memory_space<vmem>>, vector<128x128xbf16>
    %cst_27 = arith.constant dense<0.000000e+00> : vector<8x128xf32>
    %34 = tpu.matmul %32, %33, %cst_27 {dimension_numbers = #tpu.dot_dimension_numbers<[1], [0], [0], [1], [0, 0, 1, 1], [], []>} : vector<8x128xbf16>, vector<128x128xbf16>, vector<8x128xf32> -> vector<8x128xf32>
    %c0_28 = arith.constant 0 : index
    %c0_29 = arith.constant 0 : index
    %35 = vector.load %arg10[%c0_28, %c0_29] : memref<1x128xf32, #tpu.memory_space<vmem>>, vector<1x128xf32>
    %36 = vector.broadcast %35 : vector<1x128xf32> to vector<8x128xf32>
    %37 = arith.addf %34, %36 : vector<8x128xf32>
    %c0_30 = arith.constant 0 : index
    %c0_31 = arith.constant 0 : index
    %38 = vector.load %arg11[%c0_30, %c0_31] : memref<8x128xf32, #tpu.memory_space<vmem>>, vector<8x128xf32>
    tpu.vector_store %arg11[%c0_30, %c0_31], %37 {strides = array<i32>} : memref<8x128xf32, #tpu.memory_space<vmem>>, vector<8x128xf32>,
    return
  }
}

</mosaic_0001>

<llo_original>
// kernel: tpu_custom_call.1
$region0: #{tpu_custom_call.1}
  #allocation0 [shape = 'u32[]', space=smem, size = 0x4, offset = 0x4, fixed_abs, tag = 'smem constant byte address 0x4 - core index']
  #allocation1 [shape = 'u32[72,128]{1,0:T(1,128)}', space=vmem, size = 0x9000, scoped, tag = 'internal scratch']
  %s0 = inlined_call_operand.hbm [shape: bf16[256,256], index: 0, kind: input, shape index: {}]
  %s1 = inlined_call_operand.hbm [shape: bf16[256,128], index: 1, kind: input, shape index: {}]
  %s2 = inlined_call_operand.hbm [shape: bf16[128,128], index: 2, kind: input, shape index: {}]
  %s3 = inlined_call_operand.vmem [shape: f32[1,128], index: 3, kind: input, shape index: {}]
  %s4 = inlined_call_operand.hbm [shape: bf16[128,128], index: 4, kind: input, shape index: {}]
  %s5 = inlined_call_operand.vmem [shape: f32[1,128], index: 5, kind: input, shape index: {}]
  %s6 = inlined_call_operand.hbm [shape: bf16[128,128], index: 6, kind: input, shape index: {}]
  %s7 = inlined_call_operand.vmem [shape: f32[1,128], index: 7, kind: input, shape index: {}]
  %s8 = inlined_call_operand.hbm [shape: bf16[8,256], index: 8, kind: input, shape index: {}]
  %s9 = inlined_call_operand.hbm [shape: bf16[128,128], index: 9, kind: input, shape index: {}]
  %s10 = inlined_call_operand.vmem [shape: f32[1,128], index: 10, kind: input, shape index: {}]
  %s11 = inlined_call_operand.hbm [shape: f32[8,128], index: 11, kind: output, shape index: {}]
  %s12 = sld [smem:[#allocation0]]
  $region82: #{tpu_custom_call.1} parent=0
    _
  %s14 = ssub.s32 1, %s12
  %s15 = scalar_select 0, %s14, %s12
  $region1: #{tpu_custom_call.1} parent=0
    #allocation2 [shape = 'u8[131072]{0}', space=vmem, size = 0x20000, scoped, tag = 'input window, operand 0, single buffered']
    #allocation3 [shape = 's32[1]{0}', space=sflag, size = 0x4, scoped, tag = 'scoped memory for tpu_custom_call.1']
    #allocation4 [shape = 's32[1]{0}', space=sflag, size = 0x4, scoped, tag = 'scoped memory for tpu_custom_call.1']
    #allocation5 [shape = 'u8[65536]{0}', space=vmem, size = 0x10000, scoped, tag = 'input window, operand 1, single buffered']
    #allocation6 [shape = 's32[1]{0}', space=sflag, size = 0x4, scoped, tag = 'scoped memory for tpu_custom_call.1']
    #allocation7 [shape = 'u8[32768]{0}', space=vmem, size = 0x8000, scoped, tag = 'input window, operand 2, single buffered']
    #allocation8 [shape = 'u8[32768]{0}', space=vmem, size = 0x8000, scoped, tag = 'input window, operand 4, single buffered']
    #allocation9 [shape = 's32[1]{0}', space=sflag, size = 0x4, scoped, tag = 'scoped memory for tpu_custom_call.1']
    #allocation10 [shape = 'u8[32768]{0}', space=vmem, size = 0x8000, scoped, tag = 'input window, operand 6, single buffered']
    #allocation11 [shape = 'u8[4096]{0}', space=vmem, size = 0x1000, scoped, tag = 'input window, operand 8, single buffered']
    #allocation12 [shape = 's32[1]{0}', space=sflag, size = 0x4, scoped, tag = 'scoped memory for tpu_custom_call.1']
    #allocation13 [shape = 'u8[32768]{0}', space=vmem, size = 0x8000, scoped, tag = 'input window, operand 9, single buffered']
    #allocation14 [shape = 'u8[4096]{0}', space=vmem, size = 0x1000, scoped, tag = 'output window, operand 0, single buffered']
    %16 = vsyncpa [#allocation3], 0
    %17 = vsyncpa [#allocation6], 0
    %18 = vsyncpa [#allocation9], 0
    %19 = vsyncpa [#allocation12], 0
    %20 = vsyncpa [#allocation4], 0
    // Predicated region
    $region2: #{tpu_custom_call.1} parent=1 // pred_check
      _
    $region3: #{tpu_custom_call.1} parent=1 // pred_check_branch
      %22 = sbr.rel (0) target = $region5
    $region4: #{tpu_custom_call.1} parent=1 // pred_region
      %24 = vsyncadd [#allocation3], 0
      %s25 = sshll.u32 %s0, 4
      %s26 = int_to_ptr.hbm [resolvable:$true] %s25
      %s27 = sshll.u32 [#allocation2], 4
      %s28 = int_to_ptr.vmem [resolvable:$true] %s27
      %33 = dma.hbm_to_vmem [thread:$0]  %s26, 4096, %s28, [#allocation3], 128, 128, 8
    $region5: #{tpu_custom_call.1} parent=1 // pred_fallthru
      _
    // Predicated region
    $region6: #{tpu_custom_call.1} parent=1 // pred_check
      _
    $region7: #{tpu_custom_call.1} parent=1 // pred_check_branch
      %35 = sbr.rel (0) target = $region9
    $region8: #{tpu_custom_call.1} parent=1 // pred_region
      %37 = vsyncadd [#allocation6], 0
      %s38 = sshll.u32 %s1, 4
      %s39 = int_to_ptr.hbm [resolvable:$true] %s38
      %s40 = sshll.u32 [#allocation5], 4
      %s41 = int_to_ptr.vmem [resolvable:$true] %s40
      %46 = dma.hbm_to_vmem [thread:$0]  %s39, 2048, %s41, [#allocation6], 64, 64, 4
    $region9: #{tpu_custom_call.1} parent=1 // pred_fallthru
      _
    // Predicated region
    $region10: #{tpu_custom_call.1} parent=1 // pred_check
      _
    $region11: #{tpu_custom_call.1} parent=1 // pred_check_branch
      %48 = sbr.rel (0) target = $region13
    $region12: #{tpu_custom_call.1} parent=1 // pred_region
      %50 = vsyncadd [#allocation6], 0
      %s51 = sshll.u32 %s2, 4
      %s52 = int_to_ptr.hbm [resolvable:$true] %s51
      %s53 = sshll.u32 [#allocation7], 4
      %s54 = int_to_ptr.vmem [resolvable:$true] %s53
      %59 = dma.hbm_to_vmem [thread:$0]  %s52, 1024, %s54, [#allocation6], 64, 64, 4
    $region13: #{tpu_custom_call.1} parent=1 // pred_fallthru
      _
    // Predicated region
    $region14: #{tpu_custom_call.1} parent=1 // pred_check
      _
    $region15: #{tpu_custom_call.1} parent=1 // pred_check_branch
      %61 = sbr.rel (0) target = $region17
    $region16: #{tpu_custom_call.1} parent=1 // pred_region
      _
    $region17: #{tpu_custom_call.1} parent=1 // pred_fallthru
      _
    // Predicated region
    $region18: #{tpu_custom_call.1} parent=1 // pred_check
      _
    $region19: #{tpu_custom_call.1} parent=1 // pred_check_branch
      %63 = sbr.rel (0) target = $region21
    $region20: #{tpu_custom_call.1} parent=1 // pred_region
      %65 = vsyncadd [#allocation9], 0
      %s66 = sshll.u32 %s4, 4
      %s67 = int_to_ptr.hbm [resolvable:$true] %s66
      %s68 = sshll.u32 [#allocation8], 4
      %s69 = int_to_ptr.vmem [resolvable:$true] %s68
      %74 = dma.hbm_to_vmem [thread:$0]  %s67, 1024, %s69, [#allocation9], 64, 64, 4
    $region21: #{tpu_custom_call.1} parent=1 // pred_fallthru
      _
    // Predicated region
    $region22: #{tpu_custom_call.1} parent=1 // pred_check
      _
    $region23: #{tpu_custom_call.1} parent=1 // pred_check_branch
      %76 = sbr.rel (0) target = $region25
    $region24: #{tpu_custom_call.1} parent=1 // pred_region
      _
    $region25: #{tpu_custom_call.1} parent=1 // pred_fallthru
      _
    // Predicated region
    $region26: #{tpu_custom_call.1} parent=1 // pred_check
      _
    $region27: #{tpu_custom_call.1} parent=1 // pred_check_branch
      %78 = sbr.rel (0) target = $region29
    $region28: #{tpu_custom_call.1} parent=1 // pred_region
      %80 = vsyncadd [#allocation9], 0
      %s81 = sshll.u32 %s6, 4
      %s82 = int_to_ptr.hbm [resolvable:$true] %s81
      %s83 = sshll.u32 [#allocation10], 4
      %s84 = int_to_ptr.vmem [resolvable:$true] %s83
      %89 = dma.hbm_to_vmem [thread:$0]  %s82, 1024, %s84, [#allocation9], 64, 64, 4
    $region29: #{tpu_custom_call.1} parent=1 // pred_fallthru
      _
    // Predicated region
    $region30: #{tpu_custom_call.1} parent=1 // pred_check
      _
    $region31: #{tpu_custom_call.1} parent=1 // pred_check_branch
      %91 = sbr.rel (0) target = $region33
    $region32: #{tpu_custom_call.1} parent=1 // pred_region
      _
    $region33: #{tpu_custom_call.1} parent=1 // pred_fallthru
      _
    // Predicated region
    $region34: #{tpu_custom_call.1} parent=1 // pred_check
      _
    $region35: #{tpu_custom_call.1} parent=1 // pred_check_branch
      %93 = sbr.rel (0) target = $region37
    $region36: #{tpu_custom_call.1} parent=1 // pred_region
      %95 = vsyncadd [#allocation12], 0
      %s97 = sshll.u32 %s8, 4
      %s98 = int_to_ptr.hbm [resolvable:$true] %s97
      %s99 = sshll.u32 [#allocation11], 4
      %s100 = int_to_ptr.vmem [resolvable:$true] %s99
      %102 = dma.hbm_to_vmem [thread:$0]  %s98, 128, %s100, [#allocation12]
    $region37: #{tpu_custom_call.1} parent=1 // pred_fallthru
      _
    // Predicated region
    $region38: #{tpu_custom_call.1} parent=1 // pred_check
      _
    $region39: #{tpu_custom_call.1} parent=1 // pred_check_branch
      %104 = sbr.rel (0) target = $region41
    $region40: #{tpu_custom_call.1} parent=1 // pred_region
      %106 = vsyncadd [#allocation12], 0
      %s107 = sshll.u32 %s9, 4
      %s108 = int_to_ptr.hbm [resolvable:$true] %s107
      %s109 = sshll.u32 [#allocation13], 4
      %s110 = int_to_ptr.vmem [resolvable:$true] %s109
      %115 = dma.hbm_to_vmem [thread:$0]  %s108, 1024, %s110, [#allocation12], 64, 64, 4
    $region41: #{tpu_custom_call.1} parent=1 // pred_fallthru
      _
    // Predicated region
    $region42: #{tpu_custom_call.1} parent=1 // pred_check
      _
    $region43: #{tpu_custom_call.1} parent=1 // pred_check_branch
      %117 = sbr.rel (0) target = $region45
    $region44: #{tpu_custom_call.1} parent=1 // pred_region
      _
    $region45: #{tpu_custom_call.1} parent=1 // pred_fallthru
      _
    // Predicated region
    $region46: #{tpu_custom_call.1} parent=1 // pred_check
      _
    $region47: #{tpu_custom_call.1} parent=1 // pred_check_branch
      %119 = sbr.rel (0) target = $region49
    $region48: #{tpu_custom_call.1} parent=1 // pred_region
      %121 = dma.done [#allocation3], 4096
    $region49: #{tpu_custom_call.1} parent=1 // pred_fallthru
      _
    // Predicated region
    $region50: #{tpu_custom_call.1} parent=1 // pred_check
      _
    $region51: #{tpu_custom_call.1} parent=1 // pred_check_branch
      %123 = sbr.rel (0) target = $region53
    $region52: #{tpu_custom_call.1} parent=1 // pred_region
      %125 = dma.done [#allocation6], 2048
    $region53: #{tpu_custom_call.1} parent=1 // pred_fallthru
      _
    // Predicated region
    $region54: #{tpu_custom_call.1} parent=1 // pred_check
      _
    $region55: #{tpu_custom_call.1} parent=1 // pred_check_branch
      %127 = sbr.rel (0) target = $region57
    $region56: #{tpu_custom_call.1} parent=1 // pred_region
      %129 = dma.done [#allocation6], 1024
    $region57: #{tpu_custom_call.1} parent=1 // pred_fallthru
      _
    // Predicated region
    $region58: #{tpu_custom_call.1} parent=1 // pred_check
      _
    $region59: #{tpu_custom_call.1} parent=1 // pred_check_branch
      %131 = sbr.rel (0) target = $region61
    $region60: #{tpu_custom_call.1} parent=1 // pred_region
      %133 = dma.done [#allocation9], 1024
    $region61: #{tpu_custom_call.1} parent=1 // pred_fallthru
      _
    // Predicated region
    $region62: #{tpu_custom_call.1} parent=1 // pred_check
      _
    $region63: #{tpu_custom_call.1} parent=1 // pred_check_branch
      %135 = sbr.rel (0) target = $region65
    $region64: #{tpu_custom_call.1} parent=1 // pred_region
      %137 = dma.done [#allocation9], 1024
    $region65: #{tpu_custom_call.1} parent=1 // pred_fallthru
      _
    // Predicated region
    $region66: #{tpu_custom_call.1} parent=1 // pred_check
      _
    $region67: #{tpu_custom_call.1} parent=1 // pred_check_branch
      %139 = sbr.rel (0) target = $region69
    $region68: #{tpu_custom_call.1} parent=1 // pred_region
      %141 = dma.done [#allocation12], 128
    $region69: #{tpu_custom_call.1} parent=1 // pred_fallthru
      _
    // Predicated region
    $region70: #{tpu_custom_call.1} parent=1 // pred_check
      _
    $region71: #{tpu_custom_call.1} parent=1 // pred_check_branch
      %143 = sbr.rel (0) target = $region73
    $region72: #{tpu_custom_call.1} parent=1 // pred_region
      %145 = dma.done [#allocation12], 1024
    $region73: #{tpu_custom_call.1} parent=1 // pred_fallthru
      _
    %v146 = vld [vmem:[#allocation2] sm:$0xff]
    %v147 = vld [vmem:[#allocation2 + $0x8] sm:$0xff]
    %v148 = vld [vmem:[#allocation2 + $0x10] sm:$0xff]
    %v149 = vld [vmem:[#allocation2 + $0x18] sm:$0xff]
    %v150 = vld [vmem:[#allocation2 + $0x20] sm:$0xff]
    %v151 = vld [vmem:[#allocation2 + $0x28] sm:$0xff]
    %v152 = vld [vmem:[#allocation2 + $0x30] sm:$0xff]
    %v153 = vld [vmem:[#allocation2 + $0x38] sm:$0xff]
    %v154 = vld [vmem:[#allocation2 + $0x40] sm:$0xff]
    %v155 = vld [vmem:[#allocation2 + $0x48] sm:$0xff]
    %v156 = vld [vmem:[#allocation2 + $0x50] sm:$0xff]
    %v157 = vld [vmem:[#allocation2 + $0x58] sm:$0xff]
    %v158 = vld [vmem:[#allocation2 + $0x60] sm:$0xff]
    %v159 = vld [vmem:[#allocation2 + $0x68] sm:$0xff]
    %v160 = vld [vmem:[#allocation2 + $0x70] sm:$0xff]
    %v161 = vld [vmem:[#allocation2 + $0x78] sm:$0xff]
    %v162 = vld [vmem:[#allocation2 + $0x80] sm:$0xff]
    %v163 = vld [vmem:[#allocation2 + $0x88] sm:$0xff]
    %v164 = vld [vmem:[#allocation2 + $0x90] sm:$0xff]
    %v165 = vld [vmem:[#allocation2 + $0x98] sm:$0xff]
    %v166 = vld [vmem:[#allocation2 + $0xa0] sm:$0xff]
    %v167 = vld [vmem:[#allocation2 + $0xa8] sm:$0xff]
    %v168 = vld [vmem:[#allocation2 + $0xb0] sm:$0xff]
    %v169 = vld [vmem:[#allocation2 + $0xb8] sm:$0xff]
    %v170 = vld [vmem:[#allocation2 + $0xc0] sm:$0xff]
    %v171 = vld [vmem:[#allocation2 + $0xc8] sm:$0xff]
    %v172 = vld [vmem:[#allocation2 + $0xd0] sm:$0xff]
    %v173 = vld [vmem:[#allocation2 + $0xd8] sm:$0xff]
    %v174 = vld [vmem:[#allocation2 + $0xe0] sm:$0xff]
    %v175 = vld [vmem:[#allocation2 + $0xe8] sm:$0xff]
    %v176 = vld [vmem:[#allocation2 + $0xf0] sm:$0xff]
    %v177 = vld [vmem:[#allocation2 + $0xf8] sm:$0xff]
    %v178 = vld [vmem:[#allocation5] sm:$0xf]
    %v179 = vld [vmem:[#allocation5 + $0x4] sm:$0xf]
    %v180 = vld [vmem:[#allocation5 + $0x8] sm:$0xf]
    %v181 = vld [vmem:[#allocation5 + $0xc] sm:$0xf]
    %v182 = vld [vmem:[#allocation5 + $0x10] sm:$0xf]
    %v183 = vld [vmem:[#allocation5 + $0x14] sm:$0xf]
    %v184 = vld [vmem:[#allocation5 + $0x18] sm:$0xf]
    %v185 = vld [vmem:[#allocation5 + $0x1c] sm:$0xf]
    %v186 = vld [vmem:[#allocation5 + $0x20] sm:$0xf]
    %v187 = vld [vmem:[#allocation5 + $0x24] sm:$0xf]
    %v188 = vld [vmem:[#allocation5 + $0x28] sm:$0xf]
    %v189 = vld [vmem:[#allocation5 + $0x2c] sm:$0xf]
    %v190 = vld [vmem:[#allocation5 + $0x30] sm:$0xf]
    %v191 = vld [vmem:[#allocation5 + $0x34] sm:$0xf]
    %v192 = vld [vmem:[#allocation5 + $0x38] sm:$0xf]
    %v193 = vld [vmem:[#allocation5 + $0x3c] sm:$0xf]
    %v194 = vld [vmem:[#allocation5 + $0x40] sm:$0xf]
    %v195 = vld [vmem:[#allocation5 + $0x44] sm:$0xf]
    %v196 = vld [vmem:[#allocation5 + $0x48] sm:$0xf]
    %v197 = vld [vmem:[#allocation5 + $0x4c] sm:$0xf]
    %v198 = vld [vmem:[#allocation5 + $0x50] sm:$0xf]
    %v199 = vld [vmem:[#allocation5 + $0x54] sm:$0xf]
    %v200 = vld [vmem:[#allocation5 + $0x58] sm:$0xf]
    %v201 = vld [vmem:[#allocation5 + $0x5c] sm:$0xf]
    %v202 = vld [vmem:[#allocation5 + $0x60] sm:$0xf]
    %v203 = vld [vmem:[#allocation5 + $0x64] sm:$0xf]
    %v204 = vld [vmem:[#allocation5 + $0x68] sm:$0xf]
    %v205 = vld [vmem:[#allocation5 + $0x6c] sm:$0xf]
    %v206 = vld [vmem:[#allocation5 + $0x70] sm:$0xf]
    %v207 = vld [vmem:[#allocation5 + $0x74] sm:$0xf]
    %v208 = vld [vmem:[#allocation5 + $0x78] sm:$0xf]
    %v209 = vld [vmem:[#allocation5 + $0x7c] sm:$0xf]
    %v242 = vunpack.c.l.b16 %v146
    %v243 = vunpack.c.h.b16 %v146
    %v244 = vunpack.c.l.b16 %v147
    %v245 = vunpack.c.h.b16 %v147
    %v246 = vunpack.c.l.b16 %v148
    %v247 = vunpack.c.h.b16 %v148
    %v248 = vunpack.c.l.b16 %v149
    %v249 = vunpack.c.h.b16 %v149
    %v250 = vunpack.c.l.b16 %v150
    %v251 = vunpack.c.h.b16 %v150
    %v252 = vunpack.c.l.b16 %v151
    %v253 = vunpack.c.h.b16 %v151
    %v254 = vunpack.c.l.b16 %v152
    %v255 = vunpack.c.h.b16 %v152
    %v256 = vunpack.c.l.b16 %v153
    %v257 = vunpack.c.h.b16 %v153
    %v258 = vunpack.c.l.b16 %v154
    %v259 = vunpack.c.h.b16 %v154
    %v260 = vunpack.c.l.b16 %v155
    %v261 = vunpack.c.h.b16 %v155
    %v262 = vunpack.c.l.b16 %v156
    %v263 = vunpack.c.h.b16 %v156
    %v264 = vunpack.c.l.b16 %v157
    %v265 = vunpack.c.h.b16 %v157
    %v266 = vunpack.c.l.b16 %v158
    %v267 = vunpack.c.h.b16 %v158
    %v268 = vunpack.c.l.b16 %v159
    %v269 = vunpack.c.h.b16 %v159
    %v270 = vunpack.c.l.b16 %v160
    %v271 = vunpack.c.h.b16 %v160
    %v272 = vunpack.c.l.b16 %v161
    %v273 = vunpack.c.h.b16 %v161
    %v274 = vunpack.c.l.b16 %v162
    %v275 = vunpack.c.h.b16 %v162
    %v276 = vunpack.c.l.b16 %v163
    %v277 = vunpack.c.h.b16 %v163
    %v278 = vunpack.c.l.b16 %v164
    %v279 = vunpack.c.h.b16 %v164
    %v280 = vunpack.c.l.b16 %v165
    %v281 = vunpack.c.h.b16 %v165
    %v282 = vunpack.c.l.b16 %v166
    %v283 = vunpack.c.h.b16 %v166
    %v284 = vunpack.c.l.b16 %v167
    %v285 = vunpack.c.h.b16 %v167
    %v286 = vunpack.c.l.b16 %v168
    %v287 = vunpack.c.h.b16 %v168
    %v288 = vunpack.c.l.b16 %v169
    %v289 = vunpack.c.h.b16 %v169
    %v290 = vunpack.c.l.b16 %v170
    %v291 = vunpack.c.h.b16 %v170
    %v292 = vunpack.c.l.b16 %v171
    %v293 = vunpack.c.h.b16 %v171
    %v294 = vunpack.c.l.b16 %v172
    %v295 = vunpack.c.h.b16 %v172
    %v296 = vunpack.c.l.b16 %v173
    %v297 = vunpack.c.h.b16 %v173
    %v298 = vunpack.c.l.b16 %v174
    %v299 = vunpack.c.h.b16 %v174
    %v300 = vunpack.c.l.b16 %v175
    %v301 = vunpack.c.h.b16 %v175
    %v302 = vunpack.c.l.b16 %v176
    %v303 = vunpack.c.h.b16 %v176
    %v304 = vunpack.c.l.b16 %v177
    %v305 = vunpack.c.h.b16 %v177
    %v306 = vpack.c.b16 %v244, %v242
    %v307 = vpack.c.b16 %v245, %v243
    %v308 = vpack.c.b16 %v248, %v246
    %v309 = vpack.c.b16 %v249, %v247
    %v310 = vpack.c.b16 %v252, %v250
    %v311 = vpack.c.b16 %v253, %v251
    %v312 = vpack.c.b16 %v256, %v254
    %v313 = vpack.c.b16 %v257, %v255
    %v314 = vpack.c.b16 %v260, %v258
    %v315 = vpack.c.b16 %v261, %v259
    %v316 = vpack.c.b16 %v264, %v262
    %v317 = vpack.c.b16 %v265, %v263
    %v318 = vpack.c.b16 %v268, %v266
    %v319 = vpack.c.b16 %v269, %v267
    %v320 = vpack.c.b16 %v272, %v270
    %v321 = vpack.c.b16 %v273, %v271
    %v322 = vpack.c.b16 %v276, %v274
    %v323 = vpack.c.b16 %v277, %v275
    %v324 = vpack.c.b16 %v280, %v278
    %v325 = vpack.c.b16 %v281, %v279
    %v326 = vpack.c.b16 %v284, %v282
    %v327 = vpack.c.b16 %v285, %v283
    %v328 = vpack.c.b16 %v288, %v286
    %v329 = vpack.c.b16 %v289, %v287
    %v330 = vpack.c.b16 %v292, %v290
    %v331 = vpack.c.b16 %v293, %v291
    %v332 = vpack.c.b16 %v296, %v294
    %v333 = vpack.c.b16 %v297, %v295
    %v334 = vpack.c.b16 %v300, %v298
    %v335 = vpack.c.b16 %v301, %v299
    %v336 = vpack.c.b16 %v304, %v302
    %v337 = vpack.c.b16 %v305, %v303
    %v402 = vunpack.c.l.b16 %v178
    %v403 = vunpack.c.l.b16 %v179
    %v404 = vunpack.c.l.b16 %v180
    %v405 = vunpack.c.l.b16 %v181
    %v406 = vunpack.c.l.b16 %v182
    %v407 = vunpack.c.l.b16 %v183
    %v408 = vunpack.c.l.b16 %v184
    %v409 = vunpack.c.l.b16 %v185
    %v410 = vunpack.c.l.b16 %v186
    %v411 = vunpack.c.l.b16 %v187
    %v412 = vunpack.c.l.b16 %v188
    %v413 = vunpack.c.l.b16 %v189
    %v414 = vunpack.c.l.b16 %v190
    %v415 = vunpack.c.l.b16 %v191
    %v416 = vunpack.c.l.b16 %v192
    %v417 = vunpack.c.l.b16 %v193
    %v418 = vunpack.c.l.b16 %v194
    %v419 = vunpack.c.l.b16 %v195
    %v420 = vunpack.c.l.b16 %v196
    %v421 = vunpack.c.l.b16 %v197
    %v422 = vunpack.c.l.b16 %v198
    %v423 = vunpack.c.l.b16 %v199
    %v424 = vunpack.c.l.b16 %v200
    %v425 = vunpack.c.l.b16 %v201
    %v426 = vunpack.c.l.b16 %v202
    %v427 = vunpack.c.l.b16 %v203
    %v428 = vunpack.c.l.b16 %v204
    %v429 = vunpack.c.l.b16 %v205
    %v430 = vunpack.c.l.b16 %v206
    %v431 = vunpack.c.l.b16 %v207
    %v432 = vunpack.c.l.b16 %v208
    %v433 = vunpack.c.l.b16 %v209
    %v434 = vpack.c.b16 %v403, %v402
    %v435 = vpack.c.b16 %v405, %v404
    %v436 = vpack.c.b16 %v407, %v406
    %v437 = vpack.c.b16 %v409, %v408
    %v438 = vpack.c.b16 %v411, %v410
    %v439 = vpack.c.b16 %v413, %v412
    %v440 = vpack.c.b16 %v415, %v414
    %v441 = vpack.c.b16 %v417, %v416
    %v442 = vpack.c.b16 %v419, %v418
    %v443 = vpack.c.b16 %v421, %v420
    %v444 = vpack.c.b16 %v423, %v422
    %v445 = vpack.c.b16 %v425, %v424
    %v446 = vpack.c.b16 %v427, %v426
    %v447 = vpack.c.b16 %v429, %v428
    %v448 = vpack.c.b16 %v431, %v430
    %v449 = vpack.c.b16 %v433, %v432
    %466 = vmatpush.bf16.msra.mxu0 %v441
    %467 = vmatpush.bf16.msra.mxu0 %v440
    %468 = vmatpush.bf16.msra.mxu0 %v439
    %469 = vmatpush.bf16.msra.mxu0 %v438
    %470 = vmatpush.bf16.msra.mxu0 %v437
    %471 = vmatpush.bf16.msra.mxu0 %v436
    %472 = vmatpush.bf16.msra.mxu0 %v435
    %473 = vmatpush.bf16.msra.mxu0 %v434
    %474 = vmatmul.bf16.gmra.mxu0 %v306
    %v475 = vpop.f32.mrf.mxu0
    %v476 = vadd.f32 0.0, %v475
    %v477 = vpop.f32.mrf.mxu0
    %v478 = vadd.f32 0.0, %v477
    %479 = vmatmul.bf16.gmra.mxu0 %v308
    %v480 = vpop.f32.mrf.mxu0
    %v481 = vadd.f32 0.0, %v480
    %v482 = vpop.f32.mrf.mxu0
    %v483 = vadd.f32 0.0, %v482
    %484 = vmatmul.bf16.gmra.mxu0 %v310
    %v485 = vpop.f32.mrf.mxu0
    %v486 = vadd.f32 0.0, %v485
    %v487 = vpop.f32.mrf.mxu0
    %v488 = vadd.f32 0.0, %v487
    %489 = vmatmul.bf16.gmra.mxu0 %v312
    %v490 = vpop.f32.mrf.mxu0
    %v491 = vadd.f32 0.0, %v490
    %v492 = vpop.f32.mrf.mxu0
    %v493 = vadd.f32 0.0, %v492
    %494 = vmatmul.bf16.gmra.mxu0 %v314
    %v495 = vpop.f32.mrf.mxu0
    %v496 = vadd.f32 0.0, %v495
    %v497 = vpop.f32.mrf.mxu0
    %v498 = vadd.f32 0.0, %v497
    %499 = vmatmul.bf16.gmra.mxu0 %v316
    %v500 = vpop.f32.mrf.mxu0
    %v501 = vadd.f32 0.0, %v500
    %v502 = vpop.f32.mrf.mxu0
    %v503 = vadd.f32 0.0, %v502
    %504 = vmatmul.bf16.gmra.mxu0 %v318
    %v505 = vpop.f32.mrf.mxu0
    %v506 = vadd.f32 0.0, %v505
    %v507 = vpop.f32.mrf.mxu0
    %v508 = vadd.f32 0.0, %v507
    %509 = vmatmul.bf16.gmra.mxu0 %v320
    %v510 = vpop.f32.mrf.mxu0
    %v511 = vadd.f32 0.0, %v510
    %v512 = vpop.f32.mrf.mxu0
    %v513 = vadd.f32 0.0, %v512
    %514 = vmatmul.bf16.gmra.mxu0 %v322
    %v515 = vpop.f32.mrf.mxu0
    %v516 = vadd.f32 0.0, %v515
    %v517 = vpop.f32.mrf.mxu0
    %v518 = vadd.f32 0.0, %v517
    %519 = vmatmul.bf16.gmra.mxu0 %v324
    %v520 = vpop.f32.mrf.mxu0
    %v521 = vadd.f32 0.0, %v520
    %v522 = vpop.f32.mrf.mxu0
    %v523 = vadd.f32 0.0, %v522
    %524 = vmatmul.bf16.gmra.mxu0 %v326
    %v525 = vpop.f32.mrf.mxu0
    %v526 = vadd.f32 0.0, %v525
    %v527 = vpop.f32.mrf.mxu0
    %v528 = vadd.f32 0.0, %v527
    %529 = vmatmul.bf16.gmra.mxu0 %v328
    %v530 = vpop.f32.mrf.mxu0
    %v531 = vadd.f32 0.0, %v530
    %v532 = vpop.f32.mrf.mxu0
    %v533 = vadd.f32 0.0, %v532
    %534 = vmatmul.bf16.gmra.mxu0 %v330
    %v535 = vpop.f32.mrf.mxu0
    %v536 = vadd.f32 0.0, %v535
    %v537 = vpop.f32.mrf.mxu0
    %v538 = vadd.f32 0.0, %v537
    %539 = vmatmul.bf16.gmra.mxu0 %v332
    %v540 = vpop.f32.mrf.mxu0
    %v541 = vadd.f32 0.0, %v540
    %v542 = vpop.f32.mrf.mxu0
    %v543 = vadd.f32 0.0, %v542
    %544 = vmatmul.bf16.gmra.mxu0 %v334
    %v545 = vpop.f32.mrf.mxu0
    %v546 = vadd.f32 0.0, %v545
    %v547 = vpop.f32.mrf.mxu0
    %v548 = vadd.f32 0.0, %v547
    %549 = vmatmul.bf16.gmra.mxu0 %v336
    %v550 = vpop.f32.mrf.mxu0
    %v551 = vadd.f32 0.0, %v550
    %v552 = vpop.f32.mrf.mxu0
    %v553 = vadd.f32 0.0, %v552
    %554 = vdwg.mxu0
    %555 = vmatpush.bf16.msra.mxu0 %v449
    %556 = vmatpush.bf16.msra.mxu0 %v448
    %557 = vmatpush.bf16.msra.mxu0 %v447
    %558 = vmatpush.bf16.msra.mxu0 %v446
    %559 = vmatpush.bf16.msra.mxu0 %v445
    %560 = vmatpush.bf16.msra.mxu0 %v444
    %561 = vmatpush.bf16.msra.mxu0 %v443
    %562 = vmatpush.bf16.msra.mxu0 %v442
    %563 = vmatmul.bf16.gmra.mxu0 %v307
    %v564 = vpop.f32.mrf.mxu0
    %v565 = vadd.f32 %v476, %v564
    %v566 = vpop.f32.mrf.mxu0
    %v567 = vadd.f32 %v478, %v566
    %568 = vmatmul.bf16.gmra.mxu0 %v309
    %v569 = vpop.f32.mrf.mxu0
    %v570 = vadd.f32 %v481, %v569
    %v571 = vpop.f32.mrf.mxu0
    %v572 = vadd.f32 %v483, %v571
    %573 = vmatmul.bf16.gmra.mxu0 %v311
    %v574 = vpop.f32.mrf.mxu0
    %v575 = vadd.f32 %v486, %v574
    %v576 = vpop.f32.mrf.mxu0
    %v577 = vadd.f32 %v488, %v576
    %578 = vmatmul.bf16.gmra.mxu0 %v313
    %v579 = vpop.f32.mrf.mxu0
    %v580 = vadd.f32 %v491, %v579
    %v581 = vpop.f32.mrf.mxu0
    %v582 = vadd.f32 %v493, %v581
    %583 = vmatmul.bf16.gmra.mxu0 %v315
    %v584 = vpop.f32.mrf.mxu0
    %v585 = vadd.f32 %v496, %v584
    %v586 = vpop.f32.mrf.mxu0
    %v587 = vadd.f32 %v498, %v586
    %588 = vmatmul.bf16.gmra.mxu0 %v317
    %v589 = vpop.f32.mrf.mxu0
    %v590 = vadd.f32 %v501, %v589
    %v591 = vpop.f32.mrf.mxu0
    %v592 = vadd.f32 %v503, %v591
    %593 = vmatmul.bf16.gmra.mxu0 %v319
    %v594 = vpop.f32.mrf.mxu0
    %v595 = vadd.f32 %v506, %v594
    %v596 = vpop.f32.mrf.mxu0
    %v597 = vadd.f32 %v508, %v596
    %598 = vmatmul.bf16.gmra.mxu0 %v321
    %v599 = vpop.f32.mrf.mxu0
    %v600 = vadd.f32 %v511, %v599
    %v601 = vpop.f32.mrf.mxu0
    %v602 = vadd.f32 %v513, %v601
    %603 = vmatmul.bf16.gmra.mxu0 %v323
    %v604 = vpop.f32.mrf.mxu0
    %v605 = vadd.f32 %v516, %v604
    %v606 = vpop.f32.mrf.mxu0
    %v607 = vadd.f32 %v518, %v606
    %608 = vmatmul.bf16.gmra.mxu0 %v325
    %v609 = vpop.f32.mrf.mxu0
    %v610 = vadd.f32 %v521, %v609
    %v611 = vpop.f32.mrf.mxu0
    %v612 = vadd.f32 %v523, %v611
    %613 = vmatmul.bf16.gmra.mxu0 %v327
    %v614 = vpop.f32.mrf.mxu0
    %v615 = vadd.f32 %v526, %v614
    %v616 = vpop.f32.mrf.mxu0
    %v617 = vadd.f32 %v528, %v616
    %618 = vmatmul.bf16.gmra.mxu0 %v329
    %v619 = vpop.f32.mrf.mxu0
    %v620 = vadd.f32 %v531, %v619
    %v621 = vpop.f32.mrf.mxu0
    %v622 = vadd.f32 %v533, %v621
    %623 = vmatmul.bf16.gmra.mxu0 %v331
    %v624 = vpop.f32.mrf.mxu0
    %v625 = vadd.f32 %v536, %v624
    %v626 = vpop.f32.mrf.mxu0
    %v627 = vadd.f32 %v538, %v626
    %628 = vmatmul.bf16.gmra.mxu0 %v333
    %v629 = vpop.f32.mrf.mxu0
    %v630 = vadd.f32 %v541, %v629
    %v631 = vpop.f32.mrf.mxu0
    %v632 = vadd.f32 %v543, %v631
    %633 = vmatmul.bf16.gmra.mxu0 %v335
    %v634 = vpop.f32.mrf.mxu0
    %v635 = vadd.f32 %v546, %v634
    %v636 = vpop.f32.mrf.mxu0
    %v637 = vadd.f32 %v548, %v636
    %638 = vmatmul.bf16.gmra.mxu0 %v337
    %v639 = vpop.f32.mrf.mxu0
    %v640 = vadd.f32 %v551, %v639
    %v641 = vpop.f32.mrf.mxu0
    %v642 = vadd.f32 %v553, %v641
    %643 = vdwg.mxu0
    %v644 = vpack.c.bf16 %v567, %v565
    %v645 = vpack.c.bf16 %v572, %v570
    %v646 = vpack.c.bf16 %v577, %v575
    %v647 = vpack.c.bf16 %v582, %v580
    %v648 = vpack.c.bf16 %v587, %v585
    %v649 = vpack.c.bf16 %v592, %v590
    %v650 = vpack.c.bf16 %v597, %v595
    %v651 = vpack.c.bf16 %v602, %v600
    %v652 = vpack.c.bf16 %v607, %v605
    %v653 = vpack.c.bf16 %v612, %v610
    %v654 = vpack.c.bf16 %v617, %v615
    %v655 = vpack.c.bf16 %v622, %v620
    %v656 = vpack.c.bf16 %v627, %v625
    %v657 = vpack.c.bf16 %v632, %v630
    %v658 = vpack.c.bf16 %v637, %v635
    %v659 = vpack.c.bf16 %v642, %v640
    %v660 = vld [vmem:[#allocation7] sm:$0xf]
    %v661 = vld [vmem:[#allocation7 + $0x4] sm:$0xf]
    %v662 = vld [vmem:[#allocation7 + $0x8] sm:$0xf]
    %v663 = vld [vmem:[#allocation7 + $0xc] sm:$0xf]
    %v664 = vld [vmem:[#allocation7 + $0x10] sm:$0xf]
    %v665 = vld [vmem:[#allocation7 + $0x14] sm:$0xf]
    %v666 = vld [vmem:[#allocation7 + $0x18] sm:$0xf]
    %v667 = vld [vmem:[#allocation7 + $0x1c] sm:$0xf]
    %v668 = vld [vmem:[#allocation7 + $0x20] sm:$0xf]
    %v669 = vld [vmem:[#allocation7 + $0x24] sm:$0xf]
    %v670 = vld [vmem:[#allocation7 + $0x28] sm:$0xf]
    %v671 = vld [vmem:[#allocation7 + $0x2c] sm:$0xf]
    %v672 = vld [vmem:[#allocation7 + $0x30] sm:$0xf]
    %v673 = vld [vmem:[#allocation7 + $0x34] sm:$0xf]
    %v674 = vld [vmem:[#allocation7 + $0x38] sm:$0xf]
    %v675 = vld [vmem:[#allocation7 + $0x3c] sm:$0xf]
    %v676 = vld [vmem:[%s3] sm:$0x1]
    %v678 = vperm.slane %v676, 0
    %v696 = vunpack.c.l.b16 %v660
    %v697 = vunpack.c.l.b16 %v661
    %v698 = vunpack.c.l.b16 %v662
    %v699 = vunpack.c.l.b16 %v663
    %v700 = vunpack.c.l.b16 %v664
    %v701 = vunpack.c.l.b16 %v665
    %v702 = vunpack.c.l.b16 %v666
    %v703 = vunpack.c.l.b16 %v667
    %v704 = vunpack.c.l.b16 %v668
    %v705 = vunpack.c.l.b16 %v669
    %v706 = vunpack.c.l.b16 %v670
    %v707 = vunpack.c.l.b16 %v671
    %v708 = vunpack.c.l.b16 %v672
    %v709 = vunpack.c.l.b16 %v673
    %v710 = vunpack.c.l.b16 %v674
    %v711 = vunpack.c.l.b16 %v675
    %v712 = vpack.c.b16 %v697, %v696
    %v713 = vpack.c.b16 %v699, %v698
    %v714 = vpack.c.b16 %v701, %v700
    %v715 = vpack.c.b16 %v703, %v702
    %v716 = vpack.c.b16 %v705, %v704
    %v717 = vpack.c.b16 %v707, %v706
    %v718 = vpack.c.b16 %v709, %v708
    %v719 = vpack.c.b16 %v711, %v710
    %728 = vmatpush.bf16.msra.mxu0 %v719
    %729 = vmatpush.bf16.msra.mxu0 %v718
    %730 = vmatpush.bf16.msra.mxu0 %v717
    %731 = vmatpush.bf16.msra.mxu0 %v716
    %732 = vmatpush.bf16.msra.mxu0 %v715
    %733 = vmatpush.bf16.msra.mxu0 %v714
    %734 = vmatpush.bf16.msra.mxu0 %v713
    %735 = vmatpush.bf16.msra.mxu0 %v712
    %736 = vmatmul.bf16.gmra.mxu0 %v644
    %v737 = vpop.f32.mrf.mxu0
    %v738 = vadd.f32 %v678, %v737
    %v739 = vpop.f32.mrf.mxu0
    %v740 = vadd.f32 %v678, %v739
    %741 = vmatmul.bf16.gmra.mxu0 %v645
    %v742 = vpop.f32.mrf.mxu0
    %v743 = vadd.f32 %v678, %v742
    %v744 = vpop.f32.mrf.mxu0
    %v745 = vadd.f32 %v678, %v744
    %746 = vmatmul.bf16.gmra.mxu0 %v646
    %v747 = vpop.f32.mrf.mxu0
    %v748 = vadd.f32 %v678, %v747
    %v749 = vpop.f32.mrf.mxu0
    %v750 = vadd.f32 %v678, %v749
    %751 = vmatmul.bf16.gmra.mxu0 %v647
    %v752 = vpop.f32.mrf.mxu0
    %v753 = vadd.f32 %v678, %v752
    %v754 = vpop.f32.mrf.mxu0
    %v755 = vadd.f32 %v678, %v754
    %756 = vmatmul.bf16.gmra.mxu0 %v648
    %v757 = vpop.f32.mrf.mxu0
    %v758 = vadd.f32 %v678, %v757
    %v759 = vpop.f32.mrf.mxu0
    %v760 = vadd.f32 %v678, %v759
    %761 = vmatmul.bf16.gmra.mxu0 %v649
    %v762 = vpop.f32.mrf.mxu0
    %v763 = vadd.f32 %v678, %v762
    %v764 = vpop.f32.mrf.mxu0
    %v765 = vadd.f32 %v678, %v764
    %766 = vmatmul.bf16.gmra.mxu0 %v650
    %v767 = vpop.f32.mrf.mxu0
    %v768 = vadd.f32 %v678, %v767
    %v769 = vpop.f32.mrf.mxu0
    %v770 = vadd.f32 %v678, %v769
    %771 = vmatmul.bf16.gmra.mxu0 %v651
    %v772 = vpop.f32.mrf.mxu0
    %v773 = vadd.f32 %v678, %v772
    %v774 = vpop.f32.mrf.mxu0
    %v775 = vadd.f32 %v678, %v774
    %776 = vmatmul.bf16.gmra.mxu0 %v652
    %v777 = vpop.f32.mrf.mxu0
    %v778 = vadd.f32 %v678, %v777
    %v779 = vpop.f32.mrf.mxu0
    %v780 = vadd.f32 %v678, %v779
    %781 = vmatmul.bf16.gmra.mxu0 %v653
    %v782 = vpop.f32.mrf.mxu0
    %v783 = vadd.f32 %v678, %v782
    %v784 = vpop.f32.mrf.mxu0
    %v785 = vadd.f32 %v678, %v784
    %786 = vmatmul.bf16.gmra.mxu0 %v654
    %v787 = vpop.f32.mrf.mxu0
    %v788 = vadd.f32 %v678, %v787
    %v789 = vpop.f32.mrf.mxu0
    %v790 = vadd.f32 %v678, %v789
    %791 = vmatmul.bf16.gmra.mxu0 %v655
    %v792 = vpop.f32.mrf.mxu0
    %v793 = vadd.f32 %v678, %v792
    %v794 = vpop.f32.mrf.mxu0
    %v795 = vadd.f32 %v678, %v794
    %796 = vmatmul.bf16.gmra.mxu0 %v656
    %v797 = vpop.f32.mrf.mxu0
    %v798 = vadd.f32 %v678, %v797
    %v799 = vpop.f32.mrf.mxu0
    %v800 = vadd.f32 %v678, %v799
    %801 = vmatmul.bf16.gmra.mxu0 %v657
    %v802 = vpop.f32.mrf.mxu0
    %v803 = vadd.f32 %v678, %v802
    %v804 = vpop.f32.mrf.mxu0
    %v805 = vadd.f32 %v678, %v804
    %806 = vmatmul.bf16.gmra.mxu0 %v658
    %v807 = vpop.f32.mrf.mxu0
    %v808 = vadd.f32 %v678, %v807
    %v809 = vpop.f32.mrf.mxu0
    %v810 = vadd.f32 %v678, %v809
    %811 = vmatmul.bf16.gmra.mxu0 %v659
    %v812 = vpop.f32.mrf.mxu0
    %v813 = vadd.f32 %v678, %v812
    %v814 = vpop.f32.mrf.mxu0
    %v815 = vadd.f32 %v678, %v814
    %816 = vdwg.mxu0
    %v817 = vmax.f32 %v738, 0.0
    %v818 = vmax.f32 %v740, 0.0
    %v819 = vmax.f32 %v743, 0.0
    %v820 = vmax.f32 %v745, 0.0
    %v821 = vmax.f32 %v748, 0.0
    %v822 = vmax.f32 %v750, 0.0
    %v823 = vmax.f32 %v753, 0.0
    %v824 = vmax.f32 %v755, 0.0
    %v825 = vmax.f32 %v758, 0.0
    %v826 = vmax.f32 %v760, 0.0
    %v827 = vmax.f32 %v763, 0.0
    %v828 = vmax.f32 %v765, 0.0
    %v829 = vmax.f32 %v768, 0.0
    %v830 = vmax.f32 %v770, 0.0
    %v831 = vmax.f32 %v773, 0.0
    %v832 = vmax.f32 %v775, 0.0
    %v833 = vmax.f32 %v778, 0.0
    %v834 = vmax.f32 %v780, 0.0
    %v835 = vmax.f32 %v783, 0.0
    %v836 = vmax.f32 %v785, 0.0
    %v837 = vmax.f32 %v788, 0.0
    %v838 = vmax.f32 %v790, 0.0
    %v839 = vmax.f32 %v793, 0.0
    %v840 = vmax.f32 %v795, 0.0
    %v841 = vmax.f32 %v798, 0.0
    %v842 = vmax.f32 %v800, 0.0
    %v843 = vmax.f32 %v803, 0.0
    %v844 = vmax.f32 %v805, 0.0
    %v845 = vmax.f32 %v808, 0.0
    %v846 = vmax.f32 %v810, 0.0
    %v847 = vmax.f32 %v813, 0.0
    %v848 = vmax.f32 %v815, 0.0
    %v849 = vpack.c.bf16 %v818, %v817
    %v850 = vpack.c.bf16 %v820, %v819
    %v851 = vpack.c.bf16 %v822, %v821
    %v852 = vpack.c.bf16 %v824, %v823
    %v853 = vpack.c.bf16 %v826, %v825
    %v854 = vpack.c.bf16 %v828, %v827
    %v855 = vpack.c.bf16 %v830, %v829
    %v856 = vpack.c.bf16 %v832, %v831
    %v857 = vpack.c.bf16 %v834, %v833
    %v858 = vpack.c.bf16 %v836, %v835
    %v859 = vpack.c.bf16 %v838, %v837
    %v860 = vpack.c.bf16 %v840, %v839
    %v861 = vpack.c.bf16 %v842, %v841
    %v862 = vpack.c.bf16 %v844, %v843
    %v863 = vpack.c.bf16 %v846, %v845
    %v864 = vpack.c.bf16 %v848, %v847
    %865 = vmatpush.bf16.msra.mxu0 %v856
    %866 = vmatpush.bf16.msra.mxu0 %v855
    %867 = vmatpush.bf16.msra.mxu0 %v854
    %868 = vmatpush.bf16.msra.mxu0 %v853
    %869 = vmatpush.bf16.msra.mxu0 %v852
    %870 = vmatpush.bf16.msra.mxu0 %v851
    %871 = vmatpush.bf16.msra.mxu0 %v850
    %872 = vmatpush.bf16.msra.mxu0 %v849
    %873 = vmatmul.bf16.gmra.mxu0 %v306
    %v874 = vpop.f32.mrf.mxu0
    %v875 = vadd.f32 0.0, %v874
    %v876 = vpop.f32.mrf.mxu0
    %v877 = vadd.f32 0.0, %v876
    %878 = vmatmul.bf16.gmra.mxu0 %v308
    %v879 = vpop.f32.mrf.mxu0
    %v880 = vadd.f32 0.0, %v879
    %v881 = vpop.f32.mrf.mxu0
    %v882 = vadd.f32 0.0, %v881
    %883 = vmatmul.bf16.gmra.mxu0 %v310
    %v884 = vpop.f32.mrf.mxu0
    %v885 = vadd.f32 0.0, %v884
    %v886 = vpop.f32.mrf.mxu0
    %v887 = vadd.f32 0.0, %v886
    %888 = vmatmul.bf16.gmra.mxu0 %v312
    %v889 = vpop.f32.mrf.mxu0
    %v890 = vadd.f32 0.0, %v889
    %v891 = vpop.f32.mrf.mxu0
    %v892 = vadd.f32 0.0, %v891
    %893 = vmatmul.bf16.gmra.mxu0 %v314
    %v894 = vpop.f32.mrf.mxu0
    %v895 = vadd.f32 0.0, %v894
    %v896 = vpop.f32.mrf.mxu0
    %v897 = vadd.f32 0.0, %v896
    %898 = vmatmul.bf16.gmra.mxu0 %v316
    %v899 = vpop.f32.mrf.mxu0
    %v900 = vadd.f32 0.0, %v899
    %v901 = vpop.f32.mrf.mxu0
    %v902 = vadd.f32 0.0, %v901
    %903 = vmatmul.bf16.gmra.mxu0 %v318
    %v904 = vpop.f32.mrf.mxu0
    %v905 = vadd.f32 0.0, %v904
    %v906 = vpop.f32.mrf.mxu0
    %v907 = vadd.f32 0.0, %v906
    %908 = vmatmul.bf16.gmra.mxu0 %v320
    %v909 = vpop.f32.mrf.mxu0
    %v910 = vadd.f32 0.0, %v909
    %v911 = vpop.f32.mrf.mxu0
    %v912 = vadd.f32 0.0, %v911
    %913 = vmatmul.bf16.gmra.mxu0 %v322
    %v914 = vpop.f32.mrf.mxu0
    %v915 = vadd.f32 0.0, %v914
    %v916 = vpop.f32.mrf.mxu0
    %v917 = vadd.f32 0.0, %v916
    %918 = vmatmul.bf16.gmra.mxu0 %v324
    %v919 = vpop.f32.mrf.mxu0
    %v920 = vadd.f32 0.0, %v919
    %v921 = vpop.f32.mrf.mxu0
    %v922 = vadd.f32 0.0, %v921
    %923 = vmatmul.bf16.gmra.mxu0 %v326
    %v924 = vpop.f32.mrf.mxu0
    %v925 = vadd.f32 0.0, %v924
    %v926 = vpop.f32.mrf.mxu0
    %v927 = vadd.f32 0.0, %v926
    %928 = vmatmul.bf16.gmra.mxu0 %v328
    %v929 = vpop.f32.mrf.mxu0
    %v930 = vadd.f32 0.0, %v929
    %v931 = vpop.f32.mrf.mxu0
    %v932 = vadd.f32 0.0, %v931
    %933 = vmatmul.bf16.gmra.mxu0 %v330
    %v934 = vpop.f32.mrf.mxu0
    %v935 = vadd.f32 0.0, %v934
    %v936 = vpop.f32.mrf.mxu0
    %v937 = vadd.f32 0.0, %v936
    %938 = vmatmul.bf16.gmra.mxu0 %v332
    %v939 = vpop.f32.mrf.mxu0
    %v940 = vadd.f32 0.0, %v939
    %v941 = vpop.f32.mrf.mxu0
    %v942 = vadd.f32 0.0, %v941
    %943 = vmatmul.bf16.gmra.mxu0 %v334
    %v944 = vpop.f32.mrf.mxu0
    %v945 = vadd.f32 0.0, %v944
    %v946 = vpop.f32.mrf.mxu0
    %v947 = vadd.f32 0.0, %v946
    %948 = vmatmul.bf16.gmra.mxu0 %v336
    %v949 = vpop.f32.mrf.mxu0
    %v950 = vadd.f32 0.0, %v949
    %v951 = vpop.f32.mrf.mxu0
    %v952 = vadd.f32 0.0, %v951
    %953 = vdwg.mxu0
    %954 = vmatpush.bf16.msra.mxu0 %v864
    %955 = vmatpush.bf16.msra.mxu0 %v863
    %956 = vmatpush.bf16.msra.mxu0 %v862
    %957 = vmatpush.bf16.msra.mxu0 %v861
    %958 = vmatpush.bf16.msra.mxu0 %v860
    %959 = vmatpush.bf16.msra.mxu0 %v859
    %960 = vmatpush.bf16.msra.mxu0 %v858
    %961 = vmatpush.bf16.msra.mxu0 %v857
    %962 = vmatmul.bf16.gmra.mxu0 %v307
    %v963 = vpop.f32.mrf.mxu0
    %v964 = vadd.f32 %v875, %v963
    %v965 = vpop.f32.mrf.mxu0
    %v966 = vadd.f32 %v877, %v965
    %967 = vmatmul.bf16.gmra.mxu0 %v309
    %v968 = vpop.f32.mrf.mxu0
    %v969 = vadd.f32 %v880, %v968
    %v970 = vpop.f32.mrf.mxu0
    %v971 = vadd.f32 %v882, %v970
    %972 = vmatmul.bf16.gmra.mxu0 %v311
    %v973 = vpop.f32.mrf.mxu0
    %v974 = vadd.f32 %v885, %v973
    %v975 = vpop.f32.mrf.mxu0
    %v976 = vadd.f32 %v887, %v975
    %977 = vmatmul.bf16.gmra.mxu0 %v313
    %v978 = vpop.f32.mrf.mxu0
    %v979 = vadd.f32 %v890, %v978
    %v980 = vpop.f32.mrf.mxu0
    %v981 = vadd.f32 %v892, %v980
    %982 = vmatmul.bf16.gmra.mxu0 %v315
    %v983 = vpop.f32.mrf.mxu0
    %v984 = vadd.f32 %v895, %v983
    %v985 = vpop.f32.mrf.mxu0
    %v986 = vadd.f32 %v897, %v985
    %987 = vmatmul.bf16.gmra.mxu0 %v317
    %v988 = vpop.f32.mrf.mxu0
    %v989 = vadd.f32 %v900, %v988
    %v990 = vpop.f32.mrf.mxu0
    %v991 = vadd.f32 %v902, %v990
    %992 = vmatmul.bf16.gmra.mxu0 %v319
    %v993 = vpop.f32.mrf.mxu0
    %v994 = vadd.f32 %v905, %v993
    %v995 = vpop.f32.mrf.mxu0
    %v996 = vadd.f32 %v907, %v995
    %997 = vmatmul.bf16.gmra.mxu0 %v321
    %v998 = vpop.f32.mrf.mxu0
    %v999 = vadd.f32 %v910, %v998
    %v1000 = vpop.f32.mrf.mxu0
    %v1001 = vadd.f32 %v912, %v1000
    %1002 = vmatmul.bf16.gmra.mxu0 %v323
    %v1003 = vpop.f32.mrf.mxu0
    %v1004 = vadd.f32 %v915, %v1003
    %v1005 = vpop.f32.mrf.mxu0
    %v1006 = vadd.f32 %v917, %v1005
    %1007 = vmatmul.bf16.gmra.mxu0 %v325
    %v1008 = vpop.f32.mrf.mxu0
    %v1009 = vadd.f32 %v920, %v1008
    %v1010 = vpop.f32.mrf.mxu0
    %v1011 = vadd.f32 %v922, %v1010
    %1012 = vmatmul.bf16.gmra.mxu0 %v327
    %v1013 = vpop.f32.mrf.mxu0
    %v1014 = vadd.f32 %v925, %v1013
    %v1015 = vpop.f32.mrf.mxu0
    %v1016 = vadd.f32 %v927, %v1015
    %1017 = vmatmul.bf16.gmra.mxu0 %v329
    %v1018 = vpop.f32.mrf.mxu0
    %v1019 = vadd.f32 %v930, %v1018
    %v1020 = vpop.f32.mrf.mxu0
    %v1021 = vadd.f32 %v932, %v1020
    %1022 = vmatmul.bf16.gmra.mxu0 %v331
    %v1023 = vpop.f32.mrf.mxu0
    %v1024 = vadd.f32 %v935, %v1023
    %v1025 = vpop.f32.mrf.mxu0
    %v1026 = vadd.f32 %v937, %v1025
    %1027 = vmatmul.bf16.gmra.mxu0 %v333
    %v1028 = vpop.f32.mrf.mxu0
    %v1029 = vadd.f32 %v940, %v1028
    %v1030 = vpop.f32.mrf.mxu0
    %v1031 = vadd.f32 %v942, %v1030
    %1032 = vmatmul.bf16.gmra.mxu0 %v335
    %v1033 = vpop.f32.mrf.mxu0
    %v1034 = vadd.f32 %v945, %v1033
    %v1035 = vpop.f32.mrf.mxu0
    %v1036 = vadd.f32 %v947, %v1035
    %1037 = vmatmul.bf16.gmra.mxu0 %v337
    %v1038 = vpop.f32.mrf.mxu0
    %v1039 = vadd.f32 %v950, %v1038
    %v1040 = vpop.f32.mrf.mxu0
    %v1041 = vadd.f32 %v952, %v1040
    %1042 = vdwg.mxu0
    %v1043 = vpack.c.bf16 %v966, %v964
    %v1044 = vpack.c.bf16 %v971, %v969
    %v1045 = vpack.c.bf16 %v976, %v974
    %v1046 = vpack.c.bf16 %v981, %v979
    %v1047 = vpack.c.bf16 %v986, %v984
    %v1048 = vpack.c.bf16 %v991, %v989
    %v1049 = vpack.c.bf16 %v996, %v994
    %v1050 = vpack.c.bf16 %v1001, %v999
    %v1051 = vpack.c.bf16 %v1006, %v1004
    %v1052 = vpack.c.bf16 %v1011, %v1009
    %v1053 = vpack.c.bf16 %v1016, %v1014
    %v1054 = vpack.c.bf16 %v1021, %v1019
    %v1055 = vpack.c.bf16 %v1026, %v1024
    %v1056 = vpack.c.bf16 %v1031, %v1029
    %v1057 = vpack.c.bf16 %v1036, %v1034
    %v1058 = vpack.c.bf16 %v1041, %v1039
    %v1059 = vld [vmem:[#allocation8] sm:$0xf]
    %v1060 = vld [vmem:[#allocation8 + $0x4] sm:$0xf]
    %v1061 = vld [vmem:[#allocation8 + $0x8] sm:$0xf]
    %v1062 = vld [vmem:[#allocation8 + $0xc] sm:$0xf]
    %v1063 = vld [vmem:[#allocation8 + $0x10] sm:$0xf]
    %v1064 = vld [vmem:[#allocation8 + $0x14] sm:$0xf]
    %v1065 = vld [vmem:[#allocation8 + $0x18] sm:$0xf]
    %v1066 = vld [vmem:[#allocation8 + $0x1c] sm:$0xf]
    %v1067 = vld [vmem:[#allocation8 + $0x20] sm:$0xf]
    %v1068 = vld [vmem:[#allocation8 + $0x24] sm:$0xf]
    %v1069 = vld [vmem:[#allocation8 + $0x28] sm:$0xf]
    %v1070 = vld [vmem:[#allocation8 + $0x2c] sm:$0xf]
    %v1071 = vld [vmem:[#allocation8 + $0x30] sm:$0xf]
    %v1072 = vld [vmem:[#allocation8 + $0x34] sm:$0xf]
    %v1073 = vld [vmem:[#allocation8 + $0x38] sm:$0xf]
    %v1074 = vld [vmem:[#allocation8 + $0x3c] sm:$0xf]
    %v1075 = vld [vmem:[%s5] sm:$0x1]
    %v1077 = vperm.slane %v1075, 0
    %v1095 = vunpack.c.l.b16 %v1059
    %v1096 = vunpack.c.l.b16 %v1060
    %v1097 = vunpack.c.l.b16 %v1061
    %v1098 = vunpack.c.l.b16 %v1062
    %v1099 = vunpack.c.l.b16 %v1063
    %v1100 = vunpack.c.l.b16 %v1064
    %v1101 = vunpack.c.l.b16 %v1065
    %v1102 = vunpack.c.l.b16 %v1066
    %v1103 = vunpack.c.l.b16 %v1067
    %v1104 = vunpack.c.l.b16 %v1068
    %v1105 = vunpack.c.l.b16 %v1069
    %v1106 = vunpack.c.l.b16 %v1070
    %v1107 = vunpack.c.l.b16 %v1071
    %v1108 = vunpack.c.l.b16 %v1072
    %v1109 = vunpack.c.l.b16 %v1073
    %v1110 = vunpack.c.l.b16 %v1074
    %v1111 = vpack.c.b16 %v1096, %v1095
    %v1112 = vpack.c.b16 %v1098, %v1097
    %v1113 = vpack.c.b16 %v1100, %v1099
    %v1114 = vpack.c.b16 %v1102, %v1101
    %v1115 = vpack.c.b16 %v1104, %v1103
    %v1116 = vpack.c.b16 %v1106, %v1105
    %v1117 = vpack.c.b16 %v1108, %v1107
    %v1118 = vpack.c.b16 %v1110, %v1109
    %1127 = vmatpush.bf16.msra.mxu0 %v1118
    %1128 = vmatpush.bf16.msra.mxu0 %v1117
    %1129 = vmatpush.bf16.msra.mxu0 %v1116
    %1130 = vmatpush.bf16.msra.mxu0 %v1115
    %1131 = vmatpush.bf16.msra.mxu0 %v1114
    %1132 = vmatpush.bf16.msra.mxu0 %v1113
    %1133 = vmatpush.bf16.msra.mxu0 %v1112
    %1134 = vmatpush.bf16.msra.mxu0 %v1111
    %1135 = vmatmul.bf16.gmra.mxu0 %v1043
    %v1136 = vpop.f32.mrf.mxu0
    %v1137 = vadd.f32 %v1077, %v1136
    %v1138 = vpop.f32.mrf.mxu0
    %v1139 = vadd.f32 %v1077, %v1138
    %1140 = vmatmul.bf16.gmra.mxu0 %v1044
    %v1141 = vpop.f32.mrf.mxu0
    %v1142 = vadd.f32 %v1077, %v1141
    %v1143 = vpop.f32.mrf.mxu0
    %v1144 = vadd.f32 %v1077, %v1143
    %1145 = vmatmul.bf16.gmra.mxu0 %v1045
    %v1146 = vpop.f32.mrf.mxu0
    %v1147 = vadd.f32 %v1077, %v1146
    %v1148 = vpop.f32.mrf.mxu0
    %v1149 = vadd.f32 %v1077, %v1148
    %1150 = vmatmul.bf16.gmra.mxu0 %v1046
    %v1151 = vpop.f32.mrf.mxu0
    %v1152 = vadd.f32 %v1077, %v1151
    %v1153 = vpop.f32.mrf.mxu0
    %v1154 = vadd.f32 %v1077, %v1153
    %1155 = vmatmul.bf16.gmra.mxu0 %v1047
    %v1156 = vpop.f32.mrf.mxu0
    %v1157 = vadd.f32 %v1077, %v1156
    %v1158 = vpop.f32.mrf.mxu0
    %v1159 = vadd.f32 %v1077, %v1158
    %1160 = vmatmul.bf16.gmra.mxu0 %v1048
    %v1161 = vpop.f32.mrf.mxu0
    %v1162 = vadd.f32 %v1077, %v1161
    %v1163 = vpop.f32.mrf.mxu0
    %v1164 = vadd.f32 %v1077, %v1163
    %1165 = vmatmul.bf16.gmra.mxu0 %v1049
    %v1166 = vpop.f32.mrf.mxu0
    %v1167 = vadd.f32 %v1077, %v1166
    %v1168 = vpop.f32.mrf.mxu0
    %v1169 = vadd.f32 %v1077, %v1168
    %1170 = vmatmul.bf16.gmra.mxu0 %v1050
    %v1171 = vpop.f32.mrf.mxu0
    %v1172 = vadd.f32 %v1077, %v1171
    %v1173 = vpop.f32.mrf.mxu0
    %v1174 = vadd.f32 %v1077, %v1173
    %1175 = vmatmul.bf16.gmra.mxu0 %v1051
    %v1176 = vpop.f32.mrf.mxu0
    %v1177 = vadd.f32 %v1077, %v1176
    %v1178 = vpop.f32.mrf.mxu0
    %v1179 = vadd.f32 %v1077, %v1178
    %1180 = vmatmul.bf16.gmra.mxu0 %v1052
    %v1181 = vpop.f32.mrf.mxu0
    %v1182 = vadd.f32 %v1077, %v1181
    %v1183 = vpop.f32.mrf.mxu0
    %v1184 = vadd.f32 %v1077, %v1183
    %1185 = vmatmul.bf16.gmra.mxu0 %v1053
    %v1186 = vpop.f32.mrf.mxu0
    %v1187 = vadd.f32 %v1077, %v1186
    %v1188 = vpop.f32.mrf.mxu0
    %v1189 = vadd.f32 %v1077, %v1188
    %1190 = vmatmul.bf16.gmra.mxu0 %v1054
    %v1191 = vpop.f32.mrf.mxu0
    %v1192 = vadd.f32 %v1077, %v1191
    %v1193 = vpop.f32.mrf.mxu0
    %v1194 = vadd.f32 %v1077, %v1193
    %1195 = vmatmul.bf16.gmra.mxu0 %v1055
    %v1196 = vpop.f32.mrf.mxu0
    %v1197 = vadd.f32 %v1077, %v1196
    %v1198 = vpop.f32.mrf.mxu0
    %v1199 = vadd.f32 %v1077, %v1198
    %1200 = vmatmul.bf16.gmra.mxu0 %v1056
    %v1201 = vpop.f32.mrf.mxu0
    %v1202 = vadd.f32 %v1077, %v1201
    %v1203 = vpop.f32.mrf.mxu0
    %v1204 = vadd.f32 %v1077, %v1203
    %1205 = vmatmul.bf16.gmra.mxu0 %v1057
    %v1206 = vpop.f32.mrf.mxu0
    %v1207 = vadd.f32 %v1077, %v1206
    %v1208 = vpop.f32.mrf.mxu0
    %v1209 = vadd.f32 %v1077, %v1208
    %1210 = vmatmul.bf16.gmra.mxu0 %v1058
    %v1211 = vpop.f32.mrf.mxu0
    %v1212 = vadd.f32 %v1077, %v1211
    %v1213 = vpop.f32.mrf.mxu0
    %v1214 = vadd.f32 %v1077, %v1213
    %1215 = vdwg.mxu0
    %v1216 = vmax.f32 %v1137, 0.0
    %v1217 = vmax.f32 %v1139, 0.0
    %v1218 = vmax.f32 %v1142, 0.0
    %v1219 = vmax.f32 %v1144, 0.0
    %v1220 = vmax.f32 %v1147, 0.0
    %v1221 = vmax.f32 %v1149, 0.0
    %v1222 = vmax.f32 %v1152, 0.0
    %v1223 = vmax.f32 %v1154, 0.0
    %v1224 = vmax.f32 %v1157, 0.0
    %v1225 = vmax.f32 %v1159, 0.0
    %v1226 = vmax.f32 %v1162, 0.0
    %v1227 = vmax.f32 %v1164, 0.0
    %v1228 = vmax.f32 %v1167, 0.0
    %v1229 = vmax.f32 %v1169, 0.0
    %v1230 = vmax.f32 %v1172, 0.0
    %v1231 = vmax.f32 %v1174, 0.0
    %v1232 = vmax.f32 %v1177, 0.0
    %v1233 = vmax.f32 %v1179, 0.0
    %v1234 = vmax.f32 %v1182, 0.0
    %v1235 = vmax.f32 %v1184, 0.0
    %v1236 = vmax.f32 %v1187, 0.0
    %v1237 = vmax.f32 %v1189, 0.0
    %v1238 = vmax.f32 %v1192, 0.0
    %v1239 = vmax.f32 %v1194, 0.0
    %v1240 = vmax.f32 %v1197, 0.0
    %v1241 = vmax.f32 %v1199, 0.0
    %v1242 = vmax.f32 %v1202, 0.0
    %v1243 = vmax.f32 %v1204, 0.0
    %v1244 = vmax.f32 %v1207, 0.0
    %v1245 = vmax.f32 %v1209, 0.0
    %v1246 = vmax.f32 %v1212, 0.0
    %v1247 = vmax.f32 %v1214, 0.0
    %v1248 = vpack.c.bf16 %v1217, %v1216
    %v1249 = vpack.c.bf16 %v1219, %v1218
    %v1250 = vpack.c.bf16 %v1221, %v1220
    %v1251 = vpack.c.bf16 %v1223, %v1222
    %v1252 = vpack.c.bf16 %v1225, %v1224
    %v1253 = vpack.c.bf16 %v1227, %v1226
    %v1254 = vpack.c.bf16 %v1229, %v1228
    %v1255 = vpack.c.bf16 %v1231, %v1230
    %v1256 = vpack.c.bf16 %v1233, %v1232
    %v1257 = vpack.c.bf16 %v1235, %v1234
    %v1258 = vpack.c.bf16 %v1237, %v1236
    %v1259 = vpack.c.bf16 %v1239, %v1238
    %v1260 = vpack.c.bf16 %v1241, %v1240
    %v1261 = vpack.c.bf16 %v1243, %v1242
    %v1262 = vpack.c.bf16 %v1245, %v1244
    %v1263 = vpack.c.bf16 %v1247, %v1246
    %1264 = vmatpush.bf16.msra.mxu0 %v1255
    %1265 = vmatpush.bf16.msra.mxu0 %v1254
    %1266 = vmatpush.bf16.msra.mxu0 %v1253
    %1267 = vmatpush.bf16.msra.mxu0 %v1252
    %1268 = vmatpush.bf16.msra.mxu0 %v1251
    %1269 = vmatpush.bf16.msra.mxu0 %v1250
    %1270 = vmatpush.bf16.msra.mxu0 %v1249
    %1271 = vmatpush.bf16.msra.mxu0 %v1248
    %1272 = vmatmul.bf16.gmra.mxu0 %v306
    %v1273 = vpop.f32.mrf.mxu0
    %v1274 = vadd.f32 0.0, %v1273
    %v1275 = vpop.f32.mrf.mxu0
    %v1276 = vadd.f32 0.0, %v1275
    %1277 = vmatmul.bf16.gmra.mxu0 %v308
    %v1278 = vpop.f32.mrf.mxu0
    %v1279 = vadd.f32 0.0, %v1278
    %v1280 = vpop.f32.mrf.mxu0
    %v1281 = vadd.f32 0.0, %v1280
    %1282 = vmatmul.bf16.gmra.mxu0 %v310
    %v1283 = vpop.f32.mrf.mxu0
    %v1284 = vadd.f32 0.0, %v1283
    %v1285 = vpop.f32.mrf.mxu0
    %v1286 = vadd.f32 0.0, %v1285
    %1287 = vmatmul.bf16.gmra.mxu0 %v312
    %v1288 = vpop.f32.mrf.mxu0
    %v1289 = vadd.f32 0.0, %v1288
    %v1290 = vpop.f32.mrf.mxu0
    %v1291 = vadd.f32 0.0, %v1290
    %1292 = vmatmul.bf16.gmra.mxu0 %v314
    %v1293 = vpop.f32.mrf.mxu0
    %v1294 = vadd.f32 0.0, %v1293
    %v1295 = vpop.f32.mrf.mxu0
    %v1296 = vadd.f32 0.0, %v1295
    %1297 = vmatmul.bf16.gmra.mxu0 %v316
    %v1298 = vpop.f32.mrf.mxu0
    %v1299 = vadd.f32 0.0, %v1298
    %v1300 = vpop.f32.mrf.mxu0
    %v1301 = vadd.f32 0.0, %v1300
    %1302 = vmatmul.bf16.gmra.mxu0 %v318
    %v1303 = vpop.f32.mrf.mxu0
    %v1304 = vadd.f32 0.0, %v1303
    %v1305 = vpop.f32.mrf.mxu0
    %v1306 = vadd.f32 0.0, %v1305
    %1307 = vmatmul.bf16.gmra.mxu0 %v320
    %v1308 = vpop.f32.mrf.mxu0
    %v1309 = vadd.f32 0.0, %v1308
    %v1310 = vpop.f32.mrf.mxu0
    %v1311 = vadd.f32 0.0, %v1310
    %1312 = vmatmul.bf16.gmra.mxu0 %v322
    %v1313 = vpop.f32.mrf.mxu0
    %v1314 = vadd.f32 0.0, %v1313
    %v1315 = vpop.f32.mrf.mxu0
    %v1316 = vadd.f32 0.0, %v1315
    %1317 = vmatmul.bf16.gmra.mxu0 %v324
    %v1318 = vpop.f32.mrf.mxu0
    %v1319 = vadd.f32 0.0, %v1318
    %v1320 = vpop.f32.mrf.mxu0
    %v1321 = vadd.f32 0.0, %v1320
    %1322 = vmatmul.bf16.gmra.mxu0 %v326
    %v1323 = vpop.f32.mrf.mxu0
    %v1324 = vadd.f32 0.0, %v1323
    %v1325 = vpop.f32.mrf.mxu0
    %v1326 = vadd.f32 0.0, %v1325
    %1327 = vmatmul.bf16.gmra.mxu0 %v328
    %v1328 = vpop.f32.mrf.mxu0
    %v1329 = vadd.f32 0.0, %v1328
    %v1330 = vpop.f32.mrf.mxu0
    %v1331 = vadd.f32 0.0, %v1330
    %1332 = vmatmul.bf16.gmra.mxu0 %v330
    %v1333 = vpop.f32.mrf.mxu0
    %v1334 = vadd.f32 0.0, %v1333
    %v1335 = vpop.f32.mrf.mxu0
    %v1336 = vadd.f32 0.0, %v1335
    %1337 = vmatmul.bf16.gmra.mxu0 %v332
    %v1338 = vpop.f32.mrf.mxu0
    %v1339 = vadd.f32 0.0, %v1338
    %v1340 = vpop.f32.mrf.mxu0
    %v1341 = vadd.f32 0.0, %v1340
    %1342 = vmatmul.bf16.gmra.mxu0 %v334
    %v1343 = vpop.f32.mrf.mxu0
    %v1344 = vadd.f32 0.0, %v1343
    %v1345 = vpop.f32.mrf.mxu0
    %v1346 = vadd.f32 0.0, %v1345
    %1347 = vmatmul.bf16.gmra.mxu0 %v336
    %v1348 = vpop.f32.mrf.mxu0
    %v1349 = vadd.f32 0.0, %v1348
    %v1350 = vpop.f32.mrf.mxu0
    %v1351 = vadd.f32 0.0, %v1350
    %1352 = vdwg.mxu0
    %1353 = vmatpush.bf16.msra.mxu0 %v1263
    %1354 = vmatpush.bf16.msra.mxu0 %v1262
    %1355 = vmatpush.bf16.msra.mxu0 %v1261
    %1356 = vmatpush.bf16.msra.mxu0 %v1260
    %1357 = vmatpush.bf16.msra.mxu0 %v1259
    %1358 = vmatpush.bf16.msra.mxu0 %v1258
    %1359 = vmatpush.bf16.msra.mxu0 %v1257
    %1360 = vmatpush.bf16.msra.mxu0 %v1256
    %1361 = vmatmul.bf16.gmra.mxu0 %v307
    %v1362 = vpop.f32.mrf.mxu0
    %v1363 = vadd.f32 %v1274, %v1362
    %v1364 = vpop.f32.mrf.mxu0
    %v1365 = vadd.f32 %v1276, %v1364
    %1366 = vmatmul.bf16.gmra.mxu0 %v309
    %v1367 = vpop.f32.mrf.mxu0
    %v1368 = vadd.f32 %v1279, %v1367
    %v1369 = vpop.f32.mrf.mxu0
    %v1370 = vadd.f32 %v1281, %v1369
    %1371 = vmatmul.bf16.gmra.mxu0 %v311
    %v1372 = vpop.f32.mrf.mxu0
    %v1373 = vadd.f32 %v1284, %v1372
    %v1374 = vpop.f32.mrf.mxu0
    %v1375 = vadd.f32 %v1286, %v1374
    %1376 = vmatmul.bf16.gmra.mxu0 %v313
    %v1377 = vpop.f32.mrf.mxu0
    %v1378 = vadd.f32 %v1289, %v1377
    %v1379 = vpop.f32.mrf.mxu0
    %v1380 = vadd.f32 %v1291, %v1379
    %1381 = vmatmul.bf16.gmra.mxu0 %v315
    %v1382 = vpop.f32.mrf.mxu0
    %v1383 = vadd.f32 %v1294, %v1382
    %v1384 = vpop.f32.mrf.mxu0
    %v1385 = vadd.f32 %v1296, %v1384
    %1386 = vmatmul.bf16.gmra.mxu0 %v317
    %v1387 = vpop.f32.mrf.mxu0
    %v1388 = vadd.f32 %v1299, %v1387
    %v1389 = vpop.f32.mrf.mxu0
    %v1390 = vadd.f32 %v1301, %v1389
    %1391 = vmatmul.bf16.gmra.mxu0 %v319
    %v1392 = vpop.f32.mrf.mxu0
    %v1393 = vadd.f32 %v1304, %v1392
    %v1394 = vpop.f32.mrf.mxu0
    %v1395 = vadd.f32 %v1306, %v1394
    %1396 = vmatmul.bf16.gmra.mxu0 %v321
    %v1397 = vpop.f32.mrf.mxu0
    %v1398 = vadd.f32 %v1309, %v1397
    %v1399 = vpop.f32.mrf.mxu0
    %v1400 = vadd.f32 %v1311, %v1399
    %1401 = vmatmul.bf16.gmra.mxu0 %v323
    %v1402 = vpop.f32.mrf.mxu0
    %v1403 = vadd.f32 %v1314, %v1402
    %v1404 = vpop.f32.mrf.mxu0
    %v1405 = vadd.f32 %v1316, %v1404
    %1406 = vmatmul.bf16.gmra.mxu0 %v325
    %v1407 = vpop.f32.mrf.mxu0
    %v1408 = vadd.f32 %v1319, %v1407
    %v1409 = vpop.f32.mrf.mxu0
    %v1410 = vadd.f32 %v1321, %v1409
    %1411 = vmatmul.bf16.gmra.mxu0 %v327
    %v1412 = vpop.f32.mrf.mxu0
    %v1413 = vadd.f32 %v1324, %v1412
    %v1414 = vpop.f32.mrf.mxu0
    %v1415 = vadd.f32 %v1326, %v1414
    %1416 = vmatmul.bf16.gmra.mxu0 %v329
    %v1417 = vpop.f32.mrf.mxu0
    %v1418 = vadd.f32 %v1329, %v1417
    %v1419 = vpop.f32.mrf.mxu0
    %v1420 = vadd.f32 %v1331, %v1419
    %1421 = vmatmul.bf16.gmra.mxu0 %v331
    %v1422 = vpop.f32.mrf.mxu0
    %v1423 = vadd.f32 %v1334, %v1422
    %v1424 = vpop.f32.mrf.mxu0
    %v1425 = vadd.f32 %v1336, %v1424
    %1426 = vmatmul.bf16.gmra.mxu0 %v333
    %v1427 = vpop.f32.mrf.mxu0
    %v1428 = vadd.f32 %v1339, %v1427
    %v1429 = vpop.f32.mrf.mxu0
    %v1430 = vadd.f32 %v1341, %v1429
    %1431 = vmatmul.bf16.gmra.mxu0 %v335
    %v1432 = vpop.f32.mrf.mxu0
    %v1433 = vadd.f32 %v1344, %v1432
    %v1434 = vpop.f32.mrf.mxu0
    %v1435 = vadd.f32 %v1346, %v1434
    %1436 = vmatmul.bf16.gmra.mxu0 %v337
    %v1437 = vpop.f32.mrf.mxu0
    %v1438 = vadd.f32 %v1349, %v1437
    %v1439 = vpop.f32.mrf.mxu0
    %v1440 = vadd.f32 %v1351, %v1439
    %1441 = vdwg.mxu0
    %v1442 = vpack.c.bf16 %v1365, %v1363
    %v1443 = vpack.c.bf16 %v1370, %v1368
    %v1444 = vpack.c.bf16 %v1375, %v1373
    %v1445 = vpack.c.bf16 %v1380, %v1378
    %v1446 = vpack.c.bf16 %v1385, %v1383
    %v1447 = vpack.c.bf16 %v1390, %v1388
    %v1448 = vpack.c.bf16 %v1395, %v1393
    %v1449 = vpack.c.bf16 %v1400, %v1398
    %v1450 = vpack.c.bf16 %v1405, %v1403
    %v1451 = vpack.c.bf16 %v1410, %v1408
    %v1452 = vpack.c.bf16 %v1415, %v1413
    %v1453 = vpack.c.bf16 %v1420, %v1418
    %v1454 = vpack.c.bf16 %v1425, %v1423
    %v1455 = vpack.c.bf16 %v1430, %v1428
    %v1456 = vpack.c.bf16 %v1435, %v1433
    %v1457 = vpack.c.bf16 %v1440, %v1438
    %v1458 = vld [vmem:[#allocation10] sm:$0xf]
    %v1459 = vld [vmem:[#allocation10 + $0x4] sm:$0xf]
    %v1460 = vld [vmem:[#allocation10 + $0x8] sm:$0xf]
    %v1461 = vld [vmem:[#allocation10 + $0xc] sm:$0xf]
    %v1462 = vld [vmem:[#allocation10 + $0x10] sm:$0xf]
    %v1463 = vld [vmem:[#allocation10 + $0x14] sm:$0xf]
    %v1464 = vld [vmem:[#allocation10 + $0x18] sm:$0xf]
    %v1465 = vld [vmem:[#allocation10 + $0x1c] sm:$0xf]
    %v1466 = vld [vmem:[#allocation10 + $0x20] sm:$0xf]
    %v1467 = vld [vmem:[#allocation10 + $0x24] sm:$0xf]
    %v1468 = vld [vmem:[#allocation10 + $0x28] sm:$0xf]
    %v1469 = vld [vmem:[#allocation10 + $0x2c] sm:$0xf]
    %v1470 = vld [vmem:[#allocation10 + $0x30] sm:$0xf]
    %v1471 = vld [vmem:[#allocation10 + $0x34] sm:$0xf]
    %v1472 = vld [vmem:[#allocation10 + $0x38] sm:$0xf]
    %v1473 = vld [vmem:[#allocation10 + $0x3c] sm:$0xf]
    %v1474 = vld [vmem:[%s7] sm:$0x1]
    %v1476 = vperm.slane %v1474, 0
    %v1494 = vunpack.c.l.b16 %v1458
    %v1495 = vunpack.c.l.b16 %v1459
    %v1496 = vunpack.c.l.b16 %v1460
    %v1497 = vunpack.c.l.b16 %v1461
    %v1498 = vunpack.c.l.b16 %v1462
    %v1499 = vunpack.c.l.b16 %v1463
    %v1500 = vunpack.c.l.b16 %v1464
    %v1501 = vunpack.c.l.b16 %v1465
    %v1502 = vunpack.c.l.b16 %v1466
    %v1503 = vunpack.c.l.b16 %v1467
    %v1504 = vunpack.c.l.b16 %v1468
    %v1505 = vunpack.c.l.b16 %v1469
    %v1506 = vunpack.c.l.b16 %v1470
    %v1507 = vunpack.c.l.b16 %v1471
    %v1508 = vunpack.c.l.b16 %v1472
    %v1509 = vunpack.c.l.b16 %v1473
    %v1510 = vpack.c.b16 %v1495, %v1494
    %v1511 = vpack.c.b16 %v1497, %v1496
    %v1512 = vpack.c.b16 %v1499, %v1498
    %v1513 = vpack.c.b16 %v1501, %v1500
    %v1514 = vpack.c.b16 %v1503, %v1502
    %v1515 = vpack.c.b16 %v1505, %v1504
    %v1516 = vpack.c.b16 %v1507, %v1506
    %v1517 = vpack.c.b16 %v1509, %v1508
    %1526 = vmatpush.bf16.msra.mxu0 %v1517
    %1527 = vmatpush.bf16.msra.mxu0 %v1516
    %1528 = vmatpush.bf16.msra.mxu0 %v1515
    %1529 = vmatpush.bf16.msra.mxu0 %v1514
    %1530 = vmatpush.bf16.msra.mxu0 %v1513
    %1531 = vmatpush.bf16.msra.mxu0 %v1512
    %1532 = vmatpush.bf16.msra.mxu0 %v1511
    %1533 = vmatpush.bf16.msra.mxu0 %v1510
    %1534 = vmatmul.bf16.gmra.mxu0 %v1442
    %v1535 = vpop.f32.mrf.mxu0
    %v1536 = vadd.f32 %v1476, %v1535
    %v1537 = vpop.f32.mrf.mxu0
    %v1538 = vadd.f32 %v1476, %v1537
    %1539 = vmatmul.bf16.gmra.mxu0 %v1443
    %v1540 = vpop.f32.mrf.mxu0
    %v1541 = vadd.f32 %v1476, %v1540
    %v1542 = vpop.f32.mrf.mxu0
    %v1543 = vadd.f32 %v1476, %v1542
    %1544 = vmatmul.bf16.gmra.mxu0 %v1444
    %v1545 = vpop.f32.mrf.mxu0
    %v1546 = vadd.f32 %v1476, %v1545
    %v1547 = vpop.f32.mrf.mxu0
    %v1548 = vadd.f32 %v1476, %v1547
    %1549 = vmatmul.bf16.gmra.mxu0 %v1445
    %v1550 = vpop.f32.mrf.mxu0
    %v1551 = vadd.f32 %v1476, %v1550
    %v1552 = vpop.f32.mrf.mxu0
    %v1553 = vadd.f32 %v1476, %v1552
    %1554 = vmatmul.bf16.gmra.mxu0 %v1446
    %v1555 = vpop.f32.mrf.mxu0
    %v1556 = vadd.f32 %v1476, %v1555
    %v1557 = vpop.f32.mrf.mxu0
    %v1558 = vadd.f32 %v1476, %v1557
    %1559 = vmatmul.bf16.gmra.mxu0 %v1447
    %v1560 = vpop.f32.mrf.mxu0
    %v1561 = vadd.f32 %v1476, %v1560
    %v1562 = vpop.f32.mrf.mxu0
    %v1563 = vadd.f32 %v1476, %v1562
    %1564 = vmatmul.bf16.gmra.mxu0 %v1448
    %v1565 = vpop.f32.mrf.mxu0
    %v1566 = vadd.f32 %v1476, %v1565
    %v1567 = vpop.f32.mrf.mxu0
    %v1568 = vadd.f32 %v1476, %v1567
    %1569 = vmatmul.bf16.gmra.mxu0 %v1449
    %v1570 = vpop.f32.mrf.mxu0
    %v1571 = vadd.f32 %v1476, %v1570
    %v1572 = vpop.f32.mrf.mxu0
    %v1573 = vadd.f32 %v1476, %v1572
    %1574 = vmatmul.bf16.gmra.mxu0 %v1450
    %v1575 = vpop.f32.mrf.mxu0
    %v1576 = vadd.f32 %v1476, %v1575
    %v1577 = vpop.f32.mrf.mxu0
    %v1578 = vadd.f32 %v1476, %v1577
    %1579 = vmatmul.bf16.gmra.mxu0 %v1451
    %v1580 = vpop.f32.mrf.mxu0
    %v1581 = vadd.f32 %v1476, %v1580
    %v1582 = vpop.f32.mrf.mxu0
    %v1583 = vadd.f32 %v1476, %v1582
    %1584 = vmatmul.bf16.gmra.mxu0 %v1452
    %v1585 = vpop.f32.mrf.mxu0
    %v1586 = vadd.f32 %v1476, %v1585
    %v1587 = vpop.f32.mrf.mxu0
    %v1588 = vadd.f32 %v1476, %v1587
    %1589 = vmatmul.bf16.gmra.mxu0 %v1453
    %v1590 = vpop.f32.mrf.mxu0
    %v1591 = vadd.f32 %v1476, %v1590
    %v1592 = vpop.f32.mrf.mxu0
    %v1593 = vadd.f32 %v1476, %v1592
    %1594 = vmatmul.bf16.gmra.mxu0 %v1454
    %v1595 = vpop.f32.mrf.mxu0
    %v1596 = vadd.f32 %v1476, %v1595
    %v1597 = vpop.f32.mrf.mxu0
    %v1598 = vadd.f32 %v1476, %v1597
    %1599 = vmatmul.bf16.gmra.mxu0 %v1455
    %v1600 = vpop.f32.mrf.mxu0
    %v1601 = vadd.f32 %v1476, %v1600
    %v1602 = vpop.f32.mrf.mxu0
    %v1603 = vadd.f32 %v1476, %v1602
    %1604 = vmatmul.bf16.gmra.mxu0 %v1456
    %v1605 = vpop.f32.mrf.mxu0
    %v1606 = vadd.f32 %v1476, %v1605
    %v1607 = vpop.f32.mrf.mxu0
    %v1608 = vadd.f32 %v1476, %v1607
    %1609 = vmatmul.bf16.gmra.mxu0 %v1457
    %v1610 = vpop.f32.mrf.mxu0
    %v1611 = vadd.f32 %v1476, %v1610
    %v1612 = vpop.f32.mrf.mxu0
    %v1613 = vadd.f32 %v1476, %v1612
    %1614 = vdwg.mxu0
    %v1615 = vpack.c.bf16 %v1538, %v1536
    %v1616 = vpack.c.bf16 %v1543, %v1541
    %v1617 = vpack.c.bf16 %v1548, %v1546
    %v1618 = vpack.c.bf16 %v1553, %v1551
    %v1619 = vpack.c.bf16 %v1558, %v1556
    %v1620 = vpack.c.bf16 %v1563, %v1561
    %v1621 = vpack.c.bf16 %v1568, %v1566
    %v1622 = vpack.c.bf16 %v1573, %v1571
    %v1623 = vpack.c.bf16 %v1578, %v1576
    %v1624 = vpack.c.bf16 %v1583, %v1581
    %v1625 = vpack.c.bf16 %v1588, %v1586
    %v1626 = vpack.c.bf16 %v1593, %v1591
    %v1627 = vpack.c.bf16 %v1598, %v1596
    %v1628 = vpack.c.bf16 %v1603, %v1601
    %v1629 = vpack.c.bf16 %v1608, %v1606
    %v1630 = vpack.c.bf16 %v1613, %v1611
    %v1631 = vld [vmem:[#allocation11] sm:$0xff]
    %v1633 = vunpack.c.l.b16 %v1631
    %v1634 = vunpack.c.h.b16 %v1631
    %v1635 = vpack.c.b16 %v1633, %v1633
    %v1636 = vpack.c.b16 %v1634, %v1634
    %1639 = vmatpush.bf16.msra.mxu0 %v1622
    %1640 = vmatpush.bf16.msra.mxu0 %v1621
    %1641 = vmatpush.bf16.msra.mxu0 %v1620
    %1642 = vmatpush.bf16.msra.mxu0 %v1619
    %1643 = vmatpush.bf16.msra.mxu0 %v1618
    %1644 = vmatpush.bf16.msra.mxu0 %v1617
    %1645 = vmatpush.bf16.msra.mxu0 %v1616
    %1646 = vmatpush.bf16.msra.mxu0 %v1615
    %1647 = vmatmul.bf16.gmra.mxu0 %v1635
    %v1648 = vpop.f32.mrf.mxu0
    %v1649 = vadd.f32 0.0, %v1648
    %v1650 = vpop.f32.mrf.mxu0
    %1651 = vdwg.mxu0
    %1652 = vmatpush.bf16.msra.mxu0 %v1630
    %1653 = vmatpush.bf16.msra.mxu0 %v1629
    %1654 = vmatpush.bf16.msra.mxu0 %v1628
    %1655 = vmatpush.bf16.msra.mxu0 %v1627
    %1656 = vmatpush.bf16.msra.mxu0 %v1626
    %1657 = vmatpush.bf16.msra.mxu0 %v1625
    %1658 = vmatpush.bf16.msra.mxu0 %v1624
    %1659 = vmatpush.bf16.msra.mxu0 %v1623
    %1660 = vmatmul.bf16.gmra.mxu0 %v1636
    %v1661 = vpop.f32.mrf.mxu0
    %v1662 = vadd.f32 %v1649, %v1661
    %v1663 = vpop.f32.mrf.mxu0
    %1664 = vdwg.mxu0
    %v1665 = vpack.c.bf16 %v1662, %v1662
    %v1666 = vld [vmem:[#allocation13] sm:$0xf]
    %v1667 = vld [vmem:[#allocation13 + $0x4] sm:$0xf]
    %v1668 = vld [vmem:[#allocation13 + $0x8] sm:$0xf]
    %v1669 = vld [vmem:[#allocation13 + $0xc] sm:$0xf]
    %v1670 = vld [vmem:[#allocation13 + $0x10] sm:$0xf]
    %v1671 = vld [vmem:[#allocation13 + $0x14] sm:$0xf]
    %v1672 = vld [vmem:[#allocation13 + $0x18] sm:$0xf]
    %v1673 = vld [vmem:[#allocation13 + $0x1c] sm:$0xf]
    %v1674 = vld [vmem:[#allocation13 + $0x20] sm:$0xf]
    %v1675 = vld [vmem:[#allocation13 + $0x24] sm:$0xf]
    %v1676 = vld [vmem:[#allocation13 + $0x28] sm:$0xf]
    %v1677 = vld [vmem:[#allocation13 + $0x2c] sm:$0xf]
    %v1678 = vld [vmem:[#allocation13 + $0x30] sm:$0xf]
    %v1679 = vld [vmem:[#allocation13 + $0x34] sm:$0xf]
    %v1680 = vld [vmem:[#allocation13 + $0x38] sm:$0xf]
    %v1681 = vld [vmem:[#allocation13 + $0x3c] sm:$0xf]
    %v1682 = vld [vmem:[%s10] sm:$0x1]
    %v1684 = vperm.slane %v1682, 0
    %v1702 = vunpack.c.l.b16 %v1666
    %v1703 = vunpack.c.l.b16 %v1667
    %v1704 = vunpack.c.l.b16 %v1668
    %v1705 = vunpack.c.l.b16 %v1669
    %v1706 = vunpack.c.l.b16 %v1670
    %v1707 = vunpack.c.l.b16 %v1671
    %v1708 = vunpack.c.l.b16 %v1672
    %v1709 = vunpack.c.l.b16 %v1673
    %v1710 = vunpack.c.l.b16 %v1674
    %v1711 = vunpack.c.l.b16 %v1675
    %v1712 = vunpack.c.l.b16 %v1676
    %v1713 = vunpack.c.l.b16 %v1677
    %v1714 = vunpack.c.l.b16 %v1678
    %v1715 = vunpack.c.l.b16 %v1679
    %v1716 = vunpack.c.l.b16 %v1680
    %v1717 = vunpack.c.l.b16 %v1681
    %v1718 = vpack.c.b16 %v1703, %v1702
    %v1719 = vpack.c.b16 %v1705, %v1704
    %v1720 = vpack.c.b16 %v1707, %v1706
    %v1721 = vpack.c.b16 %v1709, %v1708
    %v1722 = vpack.c.b16 %v1711, %v1710
    %v1723 = vpack.c.b16 %v1713, %v1712
    %v1724 = vpack.c.b16 %v1715, %v1714
    %v1725 = vpack.c.b16 %v1717, %v1716
    %1734 = vmatpush.bf16.msra.mxu0 %v1725
    %1735 = vmatpush.bf16.msra.mxu0 %v1724
    %1736 = vmatpush.bf16.msra.mxu0 %v1723
    %1737 = vmatpush.bf16.msra.mxu0 %v1722
    %1738 = vmatpush.bf16.msra.mxu0 %v1721
    %1739 = vmatpush.bf16.msra.mxu0 %v1720
    %1740 = vmatpush.bf16.msra.mxu0 %v1719
    %1741 = vmatpush.bf16.msra.mxu0 %v1718
    %1742 = vmatmul.bf16.gmra.mxu0 %v1665
    %v1743 = vpop.f32.mrf.mxu0
    %v1744 = vadd.f32 %v1684, %v1743
    %v1745 = vpop.f32.mrf.mxu0
    %1746 = vdwg.mxu0
    %1747 = vst [vmem:[#allocation14] sm:$0xff] %v1744
    // Predicated region
    $region74: #{tpu_custom_call.1} parent=1 // pred_check
      _
    $region75: #{tpu_custom_call.1} parent=1 // pred_check_branch
      %1749 = sbr.rel (0) target = $region77
    $region76: #{tpu_custom_call.1} parent=1 // pred_region
      %1751 = vsyncadd [#allocation4], 0
      %s1753 = sshll.u32 [#allocation14], 4
      %s1754 = int_to_ptr.vmem [resolvable:$true] %s1753
      %s1755 = sshll.u32 %s11, 4
      %s1756 = int_to_ptr.hbm [resolvable:$true] %s1755
      %1758 = dma.vmem_to_hbm [thread:$0]  %s1754, 128, %s1756, [#allocation4]
    $region77: #{tpu_custom_call.1} parent=1 // pred_fallthru
      _
    // Predicated region
    $region78: #{tpu_custom_call.1} parent=1 // pred_check
      _
    $region79: #{tpu_custom_call.1} parent=1 // pred_check_branch
      %1760 = sbr.rel (0) target = $region81
    $region80: #{tpu_custom_call.1} parent=1 // pred_region
      %1762 = dma.done [#allocation4], 128
    $region81: #{tpu_custom_call.1} parent=1 // pred_fallthru
      _
    %1763 = vsyncpa [#allocation3], 1
    %1764 = vsyncpa [#allocation6], 1
    %1765 = vsyncpa [#allocation9], 1
    %1766 = vsyncpa [#allocation12], 1
    %1767 = vsyncpa [#allocation4], 1

</llo_original>
